<compile_context>
chip_gen: v7x
topology: tpu7x:2x2x1
jax: 0.10.0
libtpu: 0.0.40
codegen_flags: <defaults>
</compile_context>

<pallas_src>
import functools
import itertools

import numpy as np
import jax
import jax.numpy as jnp
from jax import lax
from jax.experimental import pallas as pl
from jax.experimental.pallas import tpu as pltpu


def _round_up(x, m):
    return ((x + m - 1) // m) * m


def _interp_kernel(pos_ref, coords_ref, table_ref, out_ref, *, grids):
    """One batch-tile of multilinear grid interpolation.

    pos_ref    : [tb, d]          float32 positions in [0, 1)^d
    coords_ref : [d, T_pad]       float32 per-dim coordinate of each table row
                                  (padded columns are -1 -> never match)
    table_ref  : [T_pad, F_pad]   float32 grid-value table (zero padded)
    out_ref    : [tb, F_pad]      float32 interpolated features (zero padded)
    """
    pos = pos_ref[...].astype(jnp.float32)                   # [tb, d]
    coords = coords_ref[...]                                  # [d, T_pad]

    # W[b, t] = prod_k factor_k[b, t]; nonzero only on the 2^d cell corners,
    # where it equals the multilinear interpolation coefficient.
    w = None
    for k in range(len(grids)):
        n_k = float(grids[k])
        scaled = pos[:, k:k + 1] * n_k                        # [tb, 1]
        lo = jnp.clip(jnp.floor(scaled), 0.0, n_k - 1.0)      # guard pos >= 1.0
        frac = scaled - lo                                    # [tb, 1] in [0, 1]
        ck = coords[k:k + 1, :]                               # [1, T_pad]
        factor = jnp.where(ck == lo, 1.0 - frac,
                           jnp.where(ck == lo + 1.0, frac, 0.0))   # [tb, T_pad]
        w = factor if w is None else w * factor

    # Single MXU matmul: gather + weighting + corner reduction fused.
    out = jnp.dot(w, table_ref[...],
                  preferred_element_type=jnp.float32,
                  precision=lax.Precision.HIGHEST)
    out_ref[...] = out.astype(out_ref.dtype)


def interpolator_forward(position, table, grid_size, *, tile_b=None):
    """Pallas wrapper: pads to TPU-friendly shapes and tiles the batch dim."""
    B, d = position.shape
    T, F = table.shape

    grid_size = tuple(int(n) for n in grid_size)
    dims = [n + 1 for n in grid_size]
    assert T == int(np.prod(dims)), "table rows must cover the full corner grid"
    strides = [int(np.prod(dims[i + 1:], dtype=np.int64)) for i in range(d)]

    # Lane-dense padding: F to a 128 multiple (unmasked stores, full MXU N),
    # T to a 128 multiple (clean W layout / MXU K).
    T_pad = _round_up(T, 128)
    F_pad = _round_up(F, 128)

    if tile_b is None:
        # Aim for exactly 2 grid steps: exploits v7x's 2 TensorCores while the
        # per-step fixed overhead stays negligible on single-TC v5e/v6e.
        tile_b = min(512, _round_up(max(-(-B // 2), 8), 8))
    else:
        tile_b = _round_up(max(8, min(int(tile_b), _round_up(B, 8))), 8)
    B_pad = _round_up(B, tile_b)

    # Per-dimension coordinate of each flattened corner-table row, precomputed
    # on the host (avoids in-kernel div/mod and captured array constants).
    # Padded columns get -1 so they never match a (non-negative) lower corner.
    t_idx = np.arange(T, dtype=np.int64)
    coords_np = np.full((d, T_pad), -1.0, dtype=np.float32)
    for k in range(d):
        coords_np[k, :T] = (t_idx // strides[k]) % dims[k]
    coords = jnp.asarray(coords_np)

    table_p = jnp.zeros((T_pad, F_pad), jnp.float32).at[:T, :F].set(
        table.astype(jnp.float32))
    pos_p = position.astype(jnp.float32)
    if B_pad != B:
        pos_p = jnp.zeros((B_pad, d), jnp.float32).at[:B].set(pos_p)

    kernel = functools.partial(_interp_kernel, grids=grid_size)

    # VMEM footprint: single-buffered table + coords, double-buffered pos/out
    # blocks, W + temporaries.  Clamp the request well below v7x's 64 MiB.
    footprint = 4 * (T_pad * F_pad + d * T_pad
                     + 2 * tile_b * d + 2 * tile_b * F_pad
                     + 3 * tile_b * T_pad)
    vmem_limit = int(min(64 << 20, max(32 << 20, 2 * footprint)))

    # Advisory cost on true (unpadded) sizes.
    cost = pl.CostEstimate(
        flops=2 * B * (2 ** d) * F,
        transcendentals=0,
        bytes_accessed=4 * (B * d + T * F + B * F),
    )

    out = pl.pallas_call(
        kernel,
        out_shape=jax.ShapeDtypeStruct((B_pad, F_pad), jnp.float32),
        grid_spec=pltpu.PrefetchScalarGridSpec(
            num_scalar_prefetch=0,
            grid=(B_pad // tile_b,),
            in_specs=[
                pl.BlockSpec((tile_b, d), lambda i: (i, 0)),
                # Constant blocks: keep whole arrays resident in VMEM, single copy.
                pl.BlockSpec(memory_space=pltpu.MemorySpace.VMEM),
                pl.BlockSpec(memory_space=pltpu.MemorySpace.VMEM),
            ],
            out_specs=pl.BlockSpec((tile_b, F_pad), lambda i: (i, 0)),
        ),
        compiler_params=pltpu.CompilerParams(
            dimension_semantics=("parallel",),
            vmem_limit_bytes=vmem_limit,
        ),
        cost_estimate=cost,
    )(pos_p, coords, table_p)

    return out[:B, :F]


def interpolator_reference(position, table, grid_size):
    """Pure-JAX reference mirroring the PyTorch forward pass."""
    grid_size = np.asarray(grid_size)
    d = len(grid_size)
    dims = [int(n) + 1 for n in grid_size]
    strides = np.array([int(np.prod(dims[i + 1:], dtype=np.int64)) for i in range(d)])
    bits = np.array(list(itertools.product([0, 1], repeat=d)))          # [C, d]

    grids = jnp.asarray(grid_size, jnp.float32)
    scaled = position * grids
    lower = jnp.floor(scaled)
    frac = scaled - lower
    bits_f = jnp.asarray(bits, jnp.float32)
    w = bits_f[None] * frac[:, None, :] + (1 - bits_f[None]) * (1 - frac[:, None, :])
    coef = jnp.prod(w, axis=-1)                                          # [B, C]
    corner = lower.astype(jnp.int32)[:, None, :] + jnp.asarray(bits, jnp.int32)[None]
    flat = jnp.sum(corner * jnp.asarray(strides, jnp.int32), axis=-1)    # [B, C]
    cv = table[flat]                                                     # [B, C, F]
    return jnp.einsum('bc,bcf->bf', coef, cv, precision=lax.Precision.HIGHEST)


if __name__ == "__main__":
    key = jax.random.PRNGKey(0)
    k_pos, k_tab, k_pos2, k_tab2 = jax.random.split(key, 4)

    # Case 1: 2-D 4x4 grid, 32 features, 256 query positions (2 parallel steps).
    grid_size = (4, 4)
    B, F = 256, 32
    d = len(grid_size)
    T = int(np.prod([n + 1 for n in grid_size]))
    table = jax.random.normal(k_tab, (T, F), dtype=jnp.float32)
    position = jax.random.uniform(k_pos, (B, d), dtype=jnp.float32,
                                  minval=0.0, maxval=0.999)
    out = jax.block_until_ready(interpolator_forward(position, table, grid_size))
    ref = interpolator_reference(position, table, grid_size)
    np.testing.assert_allclose(np.asarray(out), np.asarray(ref), rtol=1e-5, atol=1e-5)

    # Case 2: non-uniform 3-D grid exercises the O(d) factor-product W path.
    grid_size2 = (3, 2, 4)
    B2, F2 = 64, 16
    d2 = len(grid_size2)
    T2 = int(np.prod([n + 1 for n in grid_size2]))
    table2 = jax.random.normal(k_tab2, (T2, F2), dtype=jnp.float32)
    position2 = jax.random.uniform(k_pos2, (B2, d2), dtype=jnp.float32,
                                   minval=0.0, maxval=0.999)
    out2 = jax.block_until_ready(interpolator_forward(position2, table2, grid_size2))
    ref2 = interpolator_reference(position2, table2, grid_size2)
    np.testing.assert_allclose(np.asarray(out2), np.asarray(ref2), rtol=1e-5, atol=1e-5)

    print("KERNEL_OK")
</pallas_src>

<mosaic_0001>
module attributes {stable_mosaic.version = 11 : i64} {
  func.func @_interp_kernel(%arg0: i32, %arg1: memref<128x2xf32, #tpu.memory_space<vmem>>, %arg2: memref<2x128xf32, #tpu.memory_space<vmem>>, %arg3: memref<128x128xf32, #tpu.memory_space<vmem>>, %arg4: memref<128x128xf32, #tpu.memory_space<vmem>>) attributes {dimension_semantics = [#tpu.dimension_semantics<parallel>], iteration_bounds = array<i64: 2>, scalar_prefetch = 0 : i64, scratch_operands = 0 : i64, tpu.core_type = #tpu.core_type<tc>, window_params = [{transform_indices = @transform_0, window_bounds = array<i64: 128, 2>}, {pipeline_mode = #tpu.pipeline_mode<synchronous>, transform_indices = @transform_1, window_bounds = array<i64: 2, 128>}, {pipeline_mode = #tpu.pipeline_mode<synchronous>, transform_indices = @transform_2, window_bounds = array<i64: 128, 128>}, {transform_indices = @transform_3, window_bounds = array<i64: 128, 128>}]} {
    %c0 = arith.constant 0 : index
    %c0_0 = arith.constant 0 : index
    %0 = vector.load %arg1[%c0, %c0_0] : memref<128x2xf32, #tpu.memory_space<vmem>>, vector<128x2xf32>
    %c0_1 = arith.constant 0 : index
    %c0_2 = arith.constant 0 : index
    %1 = vector.load %arg2[%c0_1, %c0_2] : memref<2x128xf32, #tpu.memory_space<vmem>>, vector<2x128xf32>
    %2 = vector.extract_strided_slice %0 {offsets = [0, 0], sizes = [128, 1], strides = [1, 1]} : vector<128x2xf32> to vector<128x1xf32>
    %cst = arith.constant 4.000000e+00 : f32
    %3 = vector.broadcast %cst : f32 to vector<128x1xf32>
    %4 = arith.mulf %2, %3 : vector<128x1xf32>
    %5 = math.floor %4 : vector<128x1xf32>
    %cst_3 = arith.constant 0.000000e+00 : f32
    %cst_4 = arith.constant 3.000000e+00 : f32
    %6 = vector.broadcast %cst_3 : f32 to vector<128x1xf32>
    %7 = arith.maximumf %6, %5 : vector<128x1xf32>
    %8 = vector.broadcast %cst_4 : f32 to vector<128x1xf32>
    %9 = arith.minimumf %8, %7 : vector<128x1xf32>
    %10 = arith.subf %4, %9 : vector<128x1xf32>
    %11 = vector.extract_strided_slice %1 {offsets = [0, 0], sizes = [1, 128], strides = [1, 1]} : vector<2x128xf32> to vector<1x128xf32>
    %12 = vector.broadcast %11 : vector<1x128xf32> to vector<128x128xf32>
    %13 = vector.broadcast %9 : vector<128x1xf32> to vector<128x128xf32>
    %14 = arith.cmpf oeq, %12, %13 : vector<128x128xf32>
    %cst_5 = arith.constant 1.000000e+00 : f32
    %15 = vector.broadcast %cst_5 : f32 to vector<128x1xf32>
    %16 = arith.subf %15, %10 : vector<128x1xf32>
    %cst_6 = arith.constant 1.000000e+00 : f32
    %17 = vector.broadcast %cst_6 : f32 to vector<128x1xf32>
    %18 = arith.addf %9, %17 : vector<128x1xf32>
    %19 = vector.broadcast %11 : vector<1x128xf32> to vector<128x128xf32>
    %20 = vector.broadcast %18 : vector<128x1xf32> to vector<128x128xf32>
    %21 = arith.cmpf oeq, %19, %20 : vector<128x128xf32>
    %cst_7 = arith.constant 0.000000e+00 : f32
    %22 = vector.shape_cast %10 : vector<128x1xf32> to vector<128x1xf32>
    %23 = vector.broadcast %22 : vector<128x1xf32> to vector<128x128xf32>
    %24 = vector.broadcast %cst_7 : f32 to vector<128x128xf32>
    %25 = arith.select %21, %23, %24 : vector<128x128xi1>, vector<128x128xf32>
    %26 = vector.shape_cast %16 : vector<128x1xf32> to vector<128x1xf32>
    %27 = vector.broadcast %26 : vector<128x1xf32> to vector<128x128xf32>
    %28 = arith.select %14, %27, %25 : vector<128x128xi1>, vector<128x128xf32>
    %29 = vector.extract_strided_slice %0 {offsets = [0, 1], sizes = [128, 1], strides = [1, 1]} : vector<128x2xf32> to vector<128x1xf32>
    %cst_8 = arith.constant 4.000000e+00 : f32
    %30 = vector.broadcast %cst_8 : f32 to vector<128x1xf32>
    %31 = arith.mulf %29, %30 : vector<128x1xf32>
    %32 = math.floor %31 : vector<128x1xf32>
    %cst_9 = arith.constant 0.000000e+00 : f32
    %cst_10 = arith.constant 3.000000e+00 : f32
    %33 = vector.broadcast %cst_9 : f32 to vector<128x1xf32>
    %34 = arith.maximumf %33, %32 : vector<128x1xf32>
    %35 = vector.broadcast %cst_10 : f32 to vector<128x1xf32>
    %36 = arith.minimumf %35, %34 : vector<128x1xf32>
    %37 = arith.subf %31, %36 : vector<128x1xf32>
    %38 = vector.extract_strided_slice %1 {offsets = [1, 0], sizes = [1, 128], strides = [1, 1]} : vector<2x128xf32> to vector<1x128xf32>
    %39 = vector.broadcast %38 : vector<1x128xf32> to vector<128x128xf32>
    %40 = vector.broadcast %36 : vector<128x1xf32> to vector<128x128xf32>
    %41 = arith.cmpf oeq, %39, %40 : vector<128x128xf32>
    %cst_11 = arith.constant 1.000000e+00 : f32
    %42 = vector.broadcast %cst_11 : f32 to vector<128x1xf32>
    %43 = arith.subf %42, %37 : vector<128x1xf32>
    %cst_12 = arith.constant 1.000000e+00 : f32
    %44 = vector.broadcast %cst_12 : f32 to vector<128x1xf32>
    %45 = arith.addf %36, %44 : vector<128x1xf32>
    %46 = vector.broadcast %38 : vector<1x128xf32> to vector<128x128xf32>
    %47 = vector.broadcast %45 : vector<128x1xf32> to vector<128x128xf32>
    %48 = arith.cmpf oeq, %46, %47 : vector<128x128xf32>
    %cst_13 = arith.constant 0.000000e+00 : f32
    %49 = vector.shape_cast %37 : vector<128x1xf32> to vector<128x1xf32>
    %50 = vector.broadcast %49 : vector<128x1xf32> to vector<128x128xf32>
    %51 = vector.broadcast %cst_13 : f32 to vector<128x128xf32>
    %52 = arith.select %48, %50, %51 : vector<128x128xi1>, vector<128x128xf32>
    %53 = vector.shape_cast %43 : vector<128x1xf32> to vector<128x1xf32>
    %54 = vector.broadcast %53 : vector<128x1xf32> to vector<128x128xf32>
    %55 = arith.select %41, %54, %52 : vector<128x128xi1>, vector<128x128xf32>
    %56 = arith.mulf %28, %55 : vector<128x128xf32>
    %c0_14 = arith.constant 0 : index
    %c0_15 = arith.constant 0 : index
    %57 = vector.load %arg3[%c0_14, %c0_15] : memref<128x128xf32, #tpu.memory_space<vmem>>, vector<128x128xf32>
    %cst_16 = arith.constant dense<0.000000e+00> : vector<128x128xf32>
    %58 = tpu.matmul %56, %57, %cst_16 {dimension_numbers = #tpu.dot_dimension_numbers<[1], [0], [0], [1], [0, 0, 1, 1], [], []>, precision = #tpu.contract_precision<fp32>} : vector<128x128xf32>, vector<128x128xf32>, vector<128x128xf32> -> vector<128x128xf32>
    %c0_17 = arith.constant 0 : index
    %c0_18 = arith.constant 0 : index
    %59 = vector.load %arg4[%c0_17, %c0_18] : memref<128x128xf32, #tpu.memory_space<vmem>>, vector<128x128xf32>
    tpu.vector_store %arg4[%c0_17, %c0_18], %58 {strides = array<i32>} : memref<128x128xf32, #tpu.memory_space<vmem>>, vector<128x128xf32>,
    return
  }
  func.func @transform_0(%arg0: i32) -> (i32, i32) {
    %c0_i32 = arith.constant 0 : i32
    %c0_i32_0 = arith.constant 0 : i32
    return %arg0, %c0_i32 : i32, i32
  }
  func.func @transform_1(%arg0: i32) -> (i32, i32) {
    %c0_i32 = arith.constant 0 : i32
    %c0_i32_0 = arith.constant 0 : i32
    %c0_i32_1 = arith.constant 0 : i32
    return %c0_i32, %c0_i32_0 : i32, i32
  }
  func.func @transform_2(%arg0: i32) -> (i32, i32) {
    %c0_i32 = arith.constant 0 : i32
    %c0_i32_0 = arith.constant 0 : i32
    %c0_i32_1 = arith.constant 0 : i32
    return %c0_i32, %c0_i32_0 : i32, i32
  }
  func.func @transform_3(%arg0: i32) -> (i32, i32) {
    %c0_i32 = arith.constant 0 : i32
    %c0_i32_0 = arith.constant 0 : i32
    return %arg0, %c0_i32 : i32, i32
  }
}

</mosaic_0001>

<llo_original>
// kernel: tpu_custom_call.1
$region0: #{tpu_custom_call.1}
  #allocation0 [shape = 'u32[]', space=smem, size = 0x4, offset = 0x4, fixed_abs, tag = 'smem constant byte address 0x4 - core index']
  #allocation1 [shape = 'u32[144,128]{1,0:T(1,128)}', space=vmem, size = 0x12000, scoped, tag = 'internal scratch']
  %s0 = inlined_call_operand.vmem [shape: f32[256,2], index: 0, kind: input, shape index: {}]
  %s1 = inlined_call_operand.vmem [shape: f32[2,128], index: 1, kind: input, shape index: {}]
  %s2 = inlined_call_operand.vmem [shape: f32[128,128], index: 2, kind: input, shape index: {}]
  %s3 = inlined_call_operand.hbm [shape: f32[256,128], index: 3, kind: output, shape index: {}]
  %s4 = sld [smem:[#allocation0]]
  $region45: #{tpu_custom_call.1} parent=0
    _
  %s6 = ssub.s32 1, %s4
  %s7 = scalar_select 0, %s6, %s4
  $region1: #{tpu_custom_call.1} parent=0
    #allocation2 [shape = 'u8[131072]{0}', space=vmem, size = 0x20000, scoped, tag = 'output window, operand 0']
    #allocation3 [shape = 's32[2]{0}', space=sflag, size = 0x8, scoped, tag = 'scoped memory for tpu_custom_call.1']
    %8 = vsyncpa [#allocation3], 0
    %s9 = scalar_lea.sflag [#allocation3], 1
    %10 = vsyncpa %s9, 0
    loop: start=0, step=1, limit=4
    $region2: #{tpu_custom_call.1} parent=1 // loop_pre_header
      _
    $region3: #{tpu_custom_call.1} parent=1 // loop_header
      %s12 = sphi 0, %s16
      %p13 = scmp.ge.s32.totalorder %s12, 4
      %s22 = sphi 0, %s24
      %s25 = sphi 0, %s22
      %s26 = sphi 0, %s25
      %s42 = sphi 0, %s26
      %s46 = sphi 0, %s46
      %s48 = sphi 0, %s46
      %s49 = sphi 0, %s48
      %s63 = sphi 0, %s49
      %s67 = sphi 0, %s67
      %s69 = sphi 0, %s67
      %s70 = sphi 0, %s69
      %s84 = sphi 0, %s70
      %s90 = sphi 0, %s92
      %s93 = sphi 0, %s90
      %s94 = sphi 0, %s93
      %s110 = sphi 0, %s94
    $region4: #{tpu_custom_call.1} parent=1 // loop_header_branch
      %15 = sbr.rel (%p13) target = $region8
    $region5: #{tpu_custom_call.1} parent=1 // loop_body
      %s17 = ssub.s32 %s12, 1
      %s18 = ssub.s32 %s12, 2
      %s19 = sadd.s32 %s12, 1
      %s20 = ssub.s32 %s12, %s19
      %p21 = scmp.eq.s32.totalorder %s20, 0
      %s23 = sadd.s32 %s22, 1
      %s24 = scalar_select %p21, %s22, %s23
      %p27 = pneg %p21
      %p28 = scmp.eq.s32.totalorder %s12, 1
      %p29 = por %p27, %p28
      %p30 = scmp.ne.s32.totalorder %s22, %s25
      %p31 = scmp.eq.s32.totalorder %s12, 0
      %p32 = por %p30, %p31
      %p33 = scmp.ne.s32.totalorder %s22, %s25
      %p34 = scmp.eq.s32.totalorder %s17, 1
      %p35 = por %p33, %p34
      %p36 = scmp.ne.s32.totalorder %s25, %s26
      %p37 = scmp.eq.s32.totalorder %s17, 0
      %p38 = por %p36, %p37
      %p39 = scmp.ne.s32.totalorder %s25, %s26
      %p40 = scmp.eq.s32.totalorder %s18, 1
      %p41 = por %p39, %p40
      %p43 = scmp.ne.s32.totalorder %s26, %s42
      %p44 = scmp.eq.s32.totalorder %s18, 0
      %p45 = por %p43, %p44
      %s47 = sadd.s32 %s46, 1
      %p50 = scmp.eq.s32.totalorder %s12, 1
      %p51 = scmp.ne.s32.totalorder %s46, %s48
      %p52 = scmp.eq.s32.totalorder %s12, 0
      %p53 = por %p51, %p52
      %p54 = scmp.ne.s32.totalorder %s46, %s48
      %p55 = scmp.eq.s32.totalorder %s17, 1
      %p56 = por %p54, %p55
      %p57 = scmp.ne.s32.totalorder %s48, %s49
      %p58 = scmp.eq.s32.totalorder %s17, 0
      %p59 = por %p57, %p58
      %p60 = scmp.ne.s32.totalorder %s48, %s49
      %p61 = scmp.eq.s32.totalorder %s18, 1
      %p62 = por %p60, %p61
      %p64 = scmp.ne.s32.totalorder %s49, %s63
      %p65 = scmp.eq.s32.totalorder %s18, 0
      %p66 = por %p64, %p65
      %s68 = sadd.s32 %s67, 1
      %p71 = scmp.eq.s32.totalorder %s12, 1
      %p72 = scmp.ne.s32.totalorder %s67, %s69
      %p73 = scmp.eq.s32.totalorder %s12, 0
      %p74 = por %p72, %p73
      %p75 = scmp.ne.s32.totalorder %s67, %s69
      %p76 = scmp.eq.s32.totalorder %s17, 1
      %p77 = por %p75, %p76
      %p78 = scmp.ne.s32.totalorder %s69, %s70
      %p79 = scmp.eq.s32.totalorder %s17, 0
      %p80 = por %p78, %p79
      %p81 = scmp.ne.s32.totalorder %s69, %s70
      %p82 = scmp.eq.s32.totalorder %s18, 1
      %p83 = por %p81, %p82
      %p85 = scmp.ne.s32.totalorder %s70, %s84
      %p86 = scmp.eq.s32.totalorder %s18, 0
      %p87 = por %p85, %p86
      %s88 = ssub.s32 %s12, %s19
      %p89 = scmp.eq.s32.totalorder %s88, 0
      %s91 = sadd.s32 %s90, 1
      %s92 = scalar_select %p89, %s90, %s91
      %p95 = pneg %p89
      %p96 = scmp.eq.s32.totalorder %s12, 1
      %p97 = por %p95, %p96
      %p98 = scmp.ne.s32.totalorder %s90, %s93
      %p99 = scmp.eq.s32.totalorder %s12, 0
      %p100 = por %p98, %p99
      %p101 = scmp.ne.s32.totalorder %s90, %s93
      %p102 = scmp.eq.s32.totalorder %s17, 1
      %p103 = por %p101, %p102
      %p104 = scmp.ne.s32.totalorder %s93, %s94
      %p105 = scmp.eq.s32.totalorder %s17, 0
      %p106 = por %p104, %p105
      %p107 = scmp.ne.s32.totalorder %s93, %s94
      %p108 = scmp.eq.s32.totalorder %s18, 1
      %p109 = por %p107, %p108
      %p111 = scmp.ne.s32.totalorder %s94, %s110
      %p112 = scmp.eq.s32.totalorder %s18, 0
      %p113 = por %p111, %p112
      %p114 = scmp.le.s32.totalorder 1, %s12
      %p115 = scmp.lt.s32.totalorder %s12, 3
      %p116 = pnand %p114, %p115
      %p117 = pneg %p116
      // Predicated region
      $region9: #{tpu_custom_call.1} parent=5 // pred_check
        _
      $region10: #{tpu_custom_call.1} parent=5 // pred_check_branch
        %119 = sbr.rel (%p116) target = $region12
      $region11: #{tpu_custom_call.1} parent=5 // pred_region
        %s120 = ssub.s32 %s12, 1
        // Predicated region
        $region13: #{tpu_custom_call.1} parent=11 // pred_check
          %p121 = pneg %p59
        $region14: #{tpu_custom_call.1} parent=11 // pred_check_branch
          %123 = sbr.rel (%p121) target = $region16
        $region15: #{tpu_custom_call.1} parent=11 // pred_region
          _
        $region16: #{tpu_custom_call.1} parent=11 // pred_fallthru
          _
        // Predicated region
        $region17: #{tpu_custom_call.1} parent=11 // pred_check
          %p124 = pneg %p80
        $region18: #{tpu_custom_call.1} parent=11 // pred_check_branch
          %126 = sbr.rel (%p124) target = $region20
        $region19: #{tpu_custom_call.1} parent=11 // pred_region
          _
        $region20: #{tpu_custom_call.1} parent=11 // pred_fallthru
          _
      $region12: #{tpu_custom_call.1} parent=5 // pred_fallthru
        _
      %p127 = scmp.lt.s32.totalorder %s12, 2
      // Predicated region
      $region21: #{tpu_custom_call.1} parent=5 // pred_check
        %p128 = pneg %p127
      $region22: #{tpu_custom_call.1} parent=5 // pred_check_branch
        %130 = sbr.rel (%p128) target = $region24
      $region23: #{tpu_custom_call.1} parent=5 // pred_region
        // Predicated region
        $region25: #{tpu_custom_call.1} parent=23 // pred_check
          %p131 = pneg %p32
        $region26: #{tpu_custom_call.1} parent=23 // pred_check_branch
          %133 = sbr.rel (%p131) target = $region28
        $region27: #{tpu_custom_call.1} parent=23 // pred_region
          %s134 = smul.u32 16, %s12
          %p135 = scmp.lt.s32.totalorder %s134, 31
          %s136 = scalar_select %p135, %s134, 31
          %s137 = smul.addr %s136, 8
          %s138 = scalar_lea.vmem %s0, %s137
          %s139 = smul.u32 16, %s12
        $region28: #{tpu_custom_call.1} parent=23 // pred_fallthru
          _
      $region24: #{tpu_custom_call.1} parent=5 // pred_fallthru
        _
      %p140 = scmp.le.s32.totalorder 1, %s12
      %p141 = scmp.lt.s32.totalorder %s12, 3
      %p142 = pnand %p140, %p141
      %p143 = pneg %p142
      // Predicated region
      $region29: #{tpu_custom_call.1} parent=5 // pred_check
        _
      $region30: #{tpu_custom_call.1} parent=5 // pred_check_branch
        %145 = sbr.rel (%p142) target = $region32
      $region31: #{tpu_custom_call.1} parent=5 // pred_region
        %s146 = ssub.s32 %s12, 1
        %s147 = smul.u32 16, %s17
        %p148 = scmp.lt.s32.totalorder %s147, 31
        %s149 = scalar_select %p148, %s147, 31
        %s150 = smul.addr %s149, 8
        %s151 = scalar_lea.vmem %s0, %s150
        %p152 = pneg %p38
        %p153 = pneg %p35
        %p154 = pneg %p59
        %p155 = pneg %p56
        %p156 = pneg %p80
        %p157 = pneg %p77
        %p158 = pneg %p106
        %p159 = pneg %p103
        %s160 = sand.u32 %s93, 1
        %s161 = scalar_lea.sflag [#allocation3], %s160
        %s162 = sand.u32 %s93, 1
        %s163 = smul.addr %s162, 128
        %s164 = scalar_lea.vmem [#allocation2], %s163
        %s165 = smul.u32 16, %s17
        %p166 = scmp.lt.s32.totalorder %s165, 31
        %s167 = scalar_select %p166, %s165, 31
        %s168 = smul.addr %s167, 8
        %s169 = scalar_lea.vmem %s0, %s168
        %s170 = smul.u32 16, %s17
        %s171 = smul.u32 16, %s17
        %v172 = vld [vmem:[%s169] sm:$0xff]
        %v173 = vld [vmem:[%s169 + $0x8] sm:$0xff]
        %v174 = vld [vmem:[%s169 + $0x10] sm:$0xff]
        %v175 = vld [vmem:[%s169 + $0x18] sm:$0xff]
        %v176 = vld [vmem:[%s169 + $0x20] sm:$0xff]
        %v177 = vld [vmem:[%s169 + $0x28] sm:$0xff]
        %v178 = vld [vmem:[%s169 + $0x30] sm:$0xff]
        %v179 = vld [vmem:[%s169 + $0x38] sm:$0xff]
        %v180 = vld [vmem:[%s169 + $0x40] sm:$0xff]
        %v181 = vld [vmem:[%s169 + $0x48] sm:$0xff]
        %v182 = vld [vmem:[%s169 + $0x50] sm:$0xff]
        %v183 = vld [vmem:[%s169 + $0x58] sm:$0xff]
        %v184 = vld [vmem:[%s169 + $0x60] sm:$0xff]
        %v185 = vld [vmem:[%s169 + $0x68] sm:$0xff]
        %v186 = vld [vmem:[%s169 + $0x70] sm:$0xff]
        %v187 = vld [vmem:[%s169 + $0x78] sm:$0xff]
        %v188 = vld [vmem:[%s1] sm:$0x3]
        %v189 = vmul.f32 %v172, 4.0
        %v190 = vmul.f32 %v173, 4.0
        %v191 = vmul.f32 %v174, 4.0
        %v192 = vmul.f32 %v175, 4.0
        %v193 = vmul.f32 %v176, 4.0
        %v194 = vmul.f32 %v177, 4.0
        %v195 = vmul.f32 %v178, 4.0
        %v196 = vmul.f32 %v179, 4.0
        %v197 = vmul.f32 %v180, 4.0
        %v198 = vmul.f32 %v181, 4.0
        %v199 = vmul.f32 %v182, 4.0
        %v200 = vmul.f32 %v183, 4.0
        %v201 = vmul.f32 %v184, 4.0
        %v202 = vmul.f32 %v185, 4.0
        %v203 = vmul.f32 %v186, 4.0
        %v204 = vmul.f32 %v187, 4.0
        %v205 = vfloor.f32 %v189
        %v206 = vfloor.f32 %v190
        %v207 = vfloor.f32 %v191
        %v208 = vfloor.f32 %v192
        %v209 = vfloor.f32 %v193
        %v210 = vfloor.f32 %v194
        %v211 = vfloor.f32 %v195
        %v212 = vfloor.f32 %v196
        %v213 = vfloor.f32 %v197
        %v214 = vfloor.f32 %v198
        %v215 = vfloor.f32 %v199
        %v216 = vfloor.f32 %v200
        %v217 = vfloor.f32 %v201
        %v218 = vfloor.f32 %v202
        %v219 = vfloor.f32 %v203
        %v220 = vfloor.f32 %v204
        %v221 = vmax.f32 %v205, 0.0
        %v222 = vmax.f32 %v206, 0.0
        %v223 = vmax.f32 %v207, 0.0
        %v224 = vmax.f32 %v208, 0.0
        %v225 = vmax.f32 %v209, 0.0
        %v226 = vmax.f32 %v210, 0.0
        %v227 = vmax.f32 %v211, 0.0
        %v228 = vmax.f32 %v212, 0.0
        %v229 = vmax.f32 %v213, 0.0
        %v230 = vmax.f32 %v214, 0.0
        %v231 = vmax.f32 %v215, 0.0
        %v232 = vmax.f32 %v216, 0.0
        %v233 = vmax.f32 %v217, 0.0
        %v234 = vmax.f32 %v218, 0.0
        %v235 = vmax.f32 %v219, 0.0
        %v236 = vmax.f32 %v220, 0.0
        %v237 = vmin.f32 %v221, 3.0
        %v238 = vmin.f32 %v222, 3.0
        %v239 = vmin.f32 %v223, 3.0
        %v240 = vmin.f32 %v224, 3.0
        %v241 = vmin.f32 %v225, 3.0
        %v242 = vmin.f32 %v226, 3.0
        %v243 = vmin.f32 %v227, 3.0
        %v244 = vmin.f32 %v228, 3.0
        %v245 = vmin.f32 %v229, 3.0
        %v246 = vmin.f32 %v230, 3.0
        %v247 = vmin.f32 %v231, 3.0
        %v248 = vmin.f32 %v232, 3.0
        %v249 = vmin.f32 %v233, 3.0
        %v250 = vmin.f32 %v234, 3.0
        %v251 = vmin.f32 %v235, 3.0
        %v252 = vmin.f32 %v236, 3.0
        %v253 = vsub.f32 %v189, %v237
        %v254 = vsub.f32 %v190, %v238
        %v255 = vsub.f32 %v191, %v239
        %v256 = vsub.f32 %v192, %v240
        %v257 = vsub.f32 %v193, %v241
        %v258 = vsub.f32 %v194, %v242
        %v259 = vsub.f32 %v195, %v243
        %v260 = vsub.f32 %v196, %v244
        %v261 = vsub.f32 %v197, %v245
        %v262 = vsub.f32 %v198, %v246
        %v263 = vsub.f32 %v199, %v247
        %v264 = vsub.f32 %v200, %v248
        %v265 = vsub.f32 %v201, %v249
        %v266 = vsub.f32 %v202, %v250
        %v267 = vsub.f32 %v203, %v251
        %v268 = vsub.f32 %v204, %v252
        %v269 = vlaneseq
        %v270 = vshrl.u32 %v269, 7
        %v271 = vsub.s32 0, %v270
        %v272 = vrot.slane %v188, %v271
        %274 = vset.pattern.permute.xlu0 0
        %275 = vperm.xlu0 %274, %v237
        %v276 = vpop.permute.xlu0 %275
        %279 = vset.pattern.permute.xlu0 0
        %280 = vperm.xlu0 %279, %v238
        %v281 = vpop.permute.xlu0 %280
        %284 = vset.pattern.permute.xlu0 0
        %285 = vperm.xlu0 %284, %v239
        %v286 = vpop.permute.xlu0 %285
        %289 = vset.pattern.permute.xlu0 0
        %290 = vperm.xlu0 %289, %v240
        %v291 = vpop.permute.xlu0 %290
        %294 = vset.pattern.permute.xlu0 0
        %295 = vperm.xlu0 %294, %v241
        %v296 = vpop.permute.xlu0 %295
        %299 = vset.pattern.permute.xlu0 0
        %300 = vperm.xlu0 %299, %v242
        %v301 = vpop.permute.xlu0 %300
        %304 = vset.pattern.permute.xlu0 0
        %305 = vperm.xlu0 %304, %v243
        %v306 = vpop.permute.xlu0 %305
        %309 = vset.pattern.permute.xlu0 0
        %310 = vperm.xlu0 %309, %v244
        %v311 = vpop.permute.xlu0 %310
        %314 = vset.pattern.permute.xlu0 0
        %315 = vperm.xlu0 %314, %v245
        %v316 = vpop.permute.xlu0 %315
        %319 = vset.pattern.permute.xlu0 0
        %320 = vperm.xlu0 %319, %v246
        %v321 = vpop.permute.xlu0 %320
        %324 = vset.pattern.permute.xlu0 0
        %325 = vperm.xlu0 %324, %v247
        %v326 = vpop.permute.xlu0 %325
        %329 = vset.pattern.permute.xlu0 0
        %330 = vperm.xlu0 %329, %v248
        %v331 = vpop.permute.xlu0 %330
        %334 = vset.pattern.permute.xlu0 0
        %335 = vperm.xlu0 %334, %v249
        %v336 = vpop.permute.xlu0 %335
        %339 = vset.pattern.permute.xlu0 0
        %340 = vperm.xlu0 %339, %v250
        %v341 = vpop.permute.xlu0 %340
        %344 = vset.pattern.permute.xlu0 0
        %345 = vperm.xlu0 %344, %v251
        %v346 = vpop.permute.xlu0 %345
        %349 = vset.pattern.permute.xlu0 0
        %350 = vperm.xlu0 %349, %v252
        %v351 = vpop.permute.xlu0 %350
        %vm353 = vcmp.eq.f32.partialorder %v272, %v276
        %vm354 = vcmp.eq.f32.partialorder %v272, %v281
        %vm355 = vcmp.eq.f32.partialorder %v272, %v286
        %vm356 = vcmp.eq.f32.partialorder %v272, %v291
        %vm357 = vcmp.eq.f32.partialorder %v272, %v296
        %vm358 = vcmp.eq.f32.partialorder %v272, %v301
        %vm359 = vcmp.eq.f32.partialorder %v272, %v306
        %vm360 = vcmp.eq.f32.partialorder %v272, %v311
        %vm361 = vcmp.eq.f32.partialorder %v272, %v316
        %vm362 = vcmp.eq.f32.partialorder %v272, %v321
        %vm363 = vcmp.eq.f32.partialorder %v272, %v326
        %vm364 = vcmp.eq.f32.partialorder %v272, %v331
        %vm365 = vcmp.eq.f32.partialorder %v272, %v336
        %vm366 = vcmp.eq.f32.partialorder %v272, %v341
        %vm367 = vcmp.eq.f32.partialorder %v272, %v346
        %vm368 = vcmp.eq.f32.partialorder %v272, %v351
        %v369 = vsub.f32 1.0, %v253
        %v370 = vsub.f32 1.0, %v254
        %v371 = vsub.f32 1.0, %v255
        %v372 = vsub.f32 1.0, %v256
        %v373 = vsub.f32 1.0, %v257
        %v374 = vsub.f32 1.0, %v258
        %v375 = vsub.f32 1.0, %v259
        %v376 = vsub.f32 1.0, %v260
        %v377 = vsub.f32 1.0, %v261
        %v378 = vsub.f32 1.0, %v262
        %v379 = vsub.f32 1.0, %v263
        %v380 = vsub.f32 1.0, %v264
        %v381 = vsub.f32 1.0, %v265
        %v382 = vsub.f32 1.0, %v266
        %v383 = vsub.f32 1.0, %v267
        %v384 = vsub.f32 1.0, %v268
        %v385 = vadd.f32 %v237, 1.0
        %v386 = vadd.f32 %v238, 1.0
        %v387 = vadd.f32 %v239, 1.0
        %v388 = vadd.f32 %v240, 1.0
        %v389 = vadd.f32 %v241, 1.0
        %v390 = vadd.f32 %v242, 1.0
        %v391 = vadd.f32 %v243, 1.0
        %v392 = vadd.f32 %v244, 1.0
        %v393 = vadd.f32 %v245, 1.0
        %v394 = vadd.f32 %v246, 1.0
        %v395 = vadd.f32 %v247, 1.0
        %v396 = vadd.f32 %v248, 1.0
        %v397 = vadd.f32 %v249, 1.0
        %v398 = vadd.f32 %v250, 1.0
        %v399 = vadd.f32 %v251, 1.0
        %v400 = vadd.f32 %v252, 1.0
        %402 = vset.pattern.permute.xlu0 0
        %403 = vperm.xlu0 %402, %v385
        %v404 = vpop.permute.xlu0 %403
        %407 = vset.pattern.permute.xlu0 0
        %408 = vperm.xlu0 %407, %v386
        %v409 = vpop.permute.xlu0 %408
        %412 = vset.pattern.permute.xlu0 0
        %413 = vperm.xlu0 %412, %v387
        %v414 = vpop.permute.xlu0 %413
        %417 = vset.pattern.permute.xlu0 0
        %418 = vperm.xlu0 %417, %v388
        %v419 = vpop.permute.xlu0 %418
        %422 = vset.pattern.permute.xlu0 0
        %423 = vperm.xlu0 %422, %v389
        %v424 = vpop.permute.xlu0 %423
        %427 = vset.pattern.permute.xlu0 0
        %428 = vperm.xlu0 %427, %v390
        %v429 = vpop.permute.xlu0 %428
        %432 = vset.pattern.permute.xlu0 0
        %433 = vperm.xlu0 %432, %v391
        %v434 = vpop.permute.xlu0 %433
        %437 = vset.pattern.permute.xlu0 0
        %438 = vperm.xlu0 %437, %v392
        %v439 = vpop.permute.xlu0 %438
        %442 = vset.pattern.permute.xlu0 0
        %443 = vperm.xlu0 %442, %v393
        %v444 = vpop.permute.xlu0 %443
        %447 = vset.pattern.permute.xlu0 0
        %448 = vperm.xlu0 %447, %v394
        %v449 = vpop.permute.xlu0 %448
        %452 = vset.pattern.permute.xlu0 0
        %453 = vperm.xlu0 %452, %v395
        %v454 = vpop.permute.xlu0 %453
        %457 = vset.pattern.permute.xlu0 0
        %458 = vperm.xlu0 %457, %v396
        %v459 = vpop.permute.xlu0 %458
        %462 = vset.pattern.permute.xlu0 0
        %463 = vperm.xlu0 %462, %v397
        %v464 = vpop.permute.xlu0 %463
        %467 = vset.pattern.permute.xlu0 0
        %468 = vperm.xlu0 %467, %v398
        %v469 = vpop.permute.xlu0 %468
        %472 = vset.pattern.permute.xlu0 0
        %473 = vperm.xlu0 %472, %v399
        %v474 = vpop.permute.xlu0 %473
        %477 = vset.pattern.permute.xlu0 0
        %478 = vperm.xlu0 %477, %v400
        %v479 = vpop.permute.xlu0 %478
        %vm481 = vcmp.eq.f32.partialorder %v272, %v404
        %vm482 = vcmp.eq.f32.partialorder %v272, %v409
        %vm483 = vcmp.eq.f32.partialorder %v272, %v414
        %vm484 = vcmp.eq.f32.partialorder %v272, %v419
        %vm485 = vcmp.eq.f32.partialorder %v272, %v424
        %vm486 = vcmp.eq.f32.partialorder %v272, %v429
        %vm487 = vcmp.eq.f32.partialorder %v272, %v434
        %vm488 = vcmp.eq.f32.partialorder %v272, %v439
        %vm489 = vcmp.eq.f32.partialorder %v272, %v444
        %vm490 = vcmp.eq.f32.partialorder %v272, %v449
        %vm491 = vcmp.eq.f32.partialorder %v272, %v454
        %vm492 = vcmp.eq.f32.partialorder %v272, %v459
        %vm493 = vcmp.eq.f32.partialorder %v272, %v464
        %vm494 = vcmp.eq.f32.partialorder %v272, %v469
        %vm495 = vcmp.eq.f32.partialorder %v272, %v474
        %vm496 = vcmp.eq.f32.partialorder %v272, %v479
        %498 = vset.pattern.permute.xlu0 0
        %499 = vperm.xlu0 %498, %v253
        %v500 = vpop.permute.xlu0 %499
        %503 = vset.pattern.permute.xlu0 0
        %504 = vperm.xlu0 %503, %v254
        %v505 = vpop.permute.xlu0 %504
        %508 = vset.pattern.permute.xlu0 0
        %509 = vperm.xlu0 %508, %v255
        %v510 = vpop.permute.xlu0 %509
        %513 = vset.pattern.permute.xlu0 0
        %514 = vperm.xlu0 %513, %v256
        %v515 = vpop.permute.xlu0 %514
        %518 = vset.pattern.permute.xlu0 0
        %519 = vperm.xlu0 %518, %v257
        %v520 = vpop.permute.xlu0 %519
        %523 = vset.pattern.permute.xlu0 0
        %524 = vperm.xlu0 %523, %v258
        %v525 = vpop.permute.xlu0 %524
        %528 = vset.pattern.permute.xlu0 0
        %529 = vperm.xlu0 %528, %v259
        %v530 = vpop.permute.xlu0 %529
        %533 = vset.pattern.permute.xlu0 0
        %534 = vperm.xlu0 %533, %v260
        %v535 = vpop.permute.xlu0 %534
        %538 = vset.pattern.permute.xlu0 0
        %539 = vperm.xlu0 %538, %v261
        %v540 = vpop.permute.xlu0 %539
        %543 = vset.pattern.permute.xlu0 0
        %544 = vperm.xlu0 %543, %v262
        %v545 = vpop.permute.xlu0 %544
        %548 = vset.pattern.permute.xlu0 0
        %549 = vperm.xlu0 %548, %v263
        %v550 = vpop.permute.xlu0 %549
        %553 = vset.pattern.permute.xlu0 0
        %554 = vperm.xlu0 %553, %v264
        %v555 = vpop.permute.xlu0 %554
        %558 = vset.pattern.permute.xlu0 0
        %559 = vperm.xlu0 %558, %v265
        %v560 = vpop.permute.xlu0 %559
        %563 = vset.pattern.permute.xlu0 0
        %564 = vperm.xlu0 %563, %v266
        %v565 = vpop.permute.xlu0 %564
        %568 = vset.pattern.permute.xlu0 0
        %569 = vperm.xlu0 %568, %v267
        %v570 = vpop.permute.xlu0 %569
        %573 = vset.pattern.permute.xlu0 0
        %574 = vperm.xlu0 %573, %v268
        %v575 = vpop.permute.xlu0 %574
        %v577 = vsel %vm481, %v500, 0.0
        %v578 = vsel %vm482, %v505, 0.0
        %v579 = vsel %vm483, %v510, 0.0
        %v580 = vsel %vm484, %v515, 0.0
        %v581 = vsel %vm485, %v520, 0.0
        %v582 = vsel %vm486, %v525, 0.0
        %v583 = vsel %vm487, %v530, 0.0
        %v584 = vsel %vm488, %v535, 0.0
        %v585 = vsel %vm489, %v540, 0.0
        %v586 = vsel %vm490, %v545, 0.0
        %v587 = vsel %vm491, %v550, 0.0
        %v588 = vsel %vm492, %v555, 0.0
        %v589 = vsel %vm493, %v560, 0.0
        %v590 = vsel %vm494, %v565, 0.0
        %v591 = vsel %vm495, %v570, 0.0
        %v592 = vsel %vm496, %v575, 0.0
        %594 = vset.pattern.permute.xlu0 0
        %595 = vperm.xlu0 %594, %v369
        %v596 = vpop.permute.xlu0 %595
        %599 = vset.pattern.permute.xlu0 0
        %600 = vperm.xlu0 %599, %v370
        %v601 = vpop.permute.xlu0 %600
        %604 = vset.pattern.permute.xlu0 0
        %605 = vperm.xlu0 %604, %v371
        %v606 = vpop.permute.xlu0 %605
        %609 = vset.pattern.permute.xlu0 0
        %610 = vperm.xlu0 %609, %v372
        %v611 = vpop.permute.xlu0 %610
        %614 = vset.pattern.permute.xlu0 0
        %615 = vperm.xlu0 %614, %v373
        %v616 = vpop.permute.xlu0 %615
        %619 = vset.pattern.permute.xlu0 0
        %620 = vperm.xlu0 %619, %v374
        %v621 = vpop.permute.xlu0 %620
        %624 = vset.pattern.permute.xlu0 0
        %625 = vperm.xlu0 %624, %v375
        %v626 = vpop.permute.xlu0 %625
        %629 = vset.pattern.permute.xlu0 0
        %630 = vperm.xlu0 %629, %v376
        %v631 = vpop.permute.xlu0 %630
        %634 = vset.pattern.permute.xlu0 0
        %635 = vperm.xlu0 %634, %v377
        %v636 = vpop.permute.xlu0 %635
        %639 = vset.pattern.permute.xlu0 0
        %640 = vperm.xlu0 %639, %v378
        %v641 = vpop.permute.xlu0 %640
        %644 = vset.pattern.permute.xlu0 0
        %645 = vperm.xlu0 %644, %v379
        %v646 = vpop.permute.xlu0 %645
        %649 = vset.pattern.permute.xlu0 0
        %650 = vperm.xlu0 %649, %v380
        %v651 = vpop.permute.xlu0 %650
        %654 = vset.pattern.permute.xlu0 0
        %655 = vperm.xlu0 %654, %v381
        %v656 = vpop.permute.xlu0 %655
        %659 = vset.pattern.permute.xlu0 0
        %660 = vperm.xlu0 %659, %v382
        %v661 = vpop.permute.xlu0 %660
        %664 = vset.pattern.permute.xlu0 0
        %665 = vperm.xlu0 %664, %v383
        %v666 = vpop.permute.xlu0 %665
        %669 = vset.pattern.permute.xlu0 0
        %670 = vperm.xlu0 %669, %v384
        %v671 = vpop.permute.xlu0 %670
        %v673 = vsel %vm353, %v596, %v577
        %v674 = vsel %vm354, %v601, %v578
        %v675 = vsel %vm355, %v606, %v579
        %v676 = vsel %vm356, %v611, %v580
        %v677 = vsel %vm357, %v616, %v581
        %v678 = vsel %vm358, %v621, %v582
        %v679 = vsel %vm359, %v626, %v583
        %v680 = vsel %vm360, %v631, %v584
        %v681 = vsel %vm361, %v636, %v585
        %v682 = vsel %vm362, %v641, %v586
        %v683 = vsel %vm363, %v646, %v587
        %v684 = vsel %vm364, %v651, %v588
        %v685 = vsel %vm365, %v656, %v589
        %v686 = vsel %vm366, %v661, %v590
        %v687 = vsel %vm367, %v666, %v591
        %v688 = vsel %vm368, %v671, %v592
        %v689 = vlaneseq
        %v690 = vshrl.u32 %v689, 7
        %v691 = vsub.s32 1, %v690
        %v692 = vrot.slane %v188, %v691
        %693 = vset.pattern.permute.xlu0 1
        %694 = vperm.xlu0 %693, %v237
        %v695 = vpop.permute.xlu0 %694
        %697 = vset.pattern.permute.xlu0 1
        %698 = vperm.xlu0 %697, %v238
        %v699 = vpop.permute.xlu0 %698
        %701 = vset.pattern.permute.xlu0 1
        %702 = vperm.xlu0 %701, %v239
        %v703 = vpop.permute.xlu0 %702
        %705 = vset.pattern.permute.xlu0 1
        %706 = vperm.xlu0 %705, %v240
        %v707 = vpop.permute.xlu0 %706
        %709 = vset.pattern.permute.xlu0 1
        %710 = vperm.xlu0 %709, %v241
        %v711 = vpop.permute.xlu0 %710
        %713 = vset.pattern.permute.xlu0 1
        %714 = vperm.xlu0 %713, %v242
        %v715 = vpop.permute.xlu0 %714
        %717 = vset.pattern.permute.xlu0 1
        %718 = vperm.xlu0 %717, %v243
        %v719 = vpop.permute.xlu0 %718
        %721 = vset.pattern.permute.xlu0 1
        %722 = vperm.xlu0 %721, %v244
        %v723 = vpop.permute.xlu0 %722
        %725 = vset.pattern.permute.xlu0 1
        %726 = vperm.xlu0 %725, %v245
        %v727 = vpop.permute.xlu0 %726
        %729 = vset.pattern.permute.xlu0 1
        %730 = vperm.xlu0 %729, %v246
        %v731 = vpop.permute.xlu0 %730
        %733 = vset.pattern.permute.xlu0 1
        %734 = vperm.xlu0 %733, %v247
        %v735 = vpop.permute.xlu0 %734
        %737 = vset.pattern.permute.xlu0 1
        %738 = vperm.xlu0 %737, %v248
        %v739 = vpop.permute.xlu0 %738
        %741 = vset.pattern.permute.xlu0 1
        %742 = vperm.xlu0 %741, %v249
        %v743 = vpop.permute.xlu0 %742
        %745 = vset.pattern.permute.xlu0 1
        %746 = vperm.xlu0 %745, %v250
        %v747 = vpop.permute.xlu0 %746
        %749 = vset.pattern.permute.xlu0 1
        %750 = vperm.xlu0 %749, %v251
        %v751 = vpop.permute.xlu0 %750
        %753 = vset.pattern.permute.xlu0 1
        %754 = vperm.xlu0 %753, %v252
        %v755 = vpop.permute.xlu0 %754
        %vm757 = vcmp.eq.f32.partialorder %v692, %v695
        %vm758 = vcmp.eq.f32.partialorder %v692, %v699
        %vm759 = vcmp.eq.f32.partialorder %v692, %v703
        %vm760 = vcmp.eq.f32.partialorder %v692, %v707
        %vm761 = vcmp.eq.f32.partialorder %v692, %v711
        %vm762 = vcmp.eq.f32.partialorder %v692, %v715
        %vm763 = vcmp.eq.f32.partialorder %v692, %v719
        %vm764 = vcmp.eq.f32.partialorder %v692, %v723
        %vm765 = vcmp.eq.f32.partialorder %v692, %v727
        %vm766 = vcmp.eq.f32.partialorder %v692, %v731
        %vm767 = vcmp.eq.f32.partialorder %v692, %v735
        %vm768 = vcmp.eq.f32.partialorder %v692, %v739
        %vm769 = vcmp.eq.f32.partialorder %v692, %v743
        %vm770 = vcmp.eq.f32.partialorder %v692, %v747
        %vm771 = vcmp.eq.f32.partialorder %v692, %v751
        %vm772 = vcmp.eq.f32.partialorder %v692, %v755
        %773 = vset.pattern.permute.xlu0 1
        %774 = vperm.xlu0 %773, %v385
        %v775 = vpop.permute.xlu0 %774
        %777 = vset.pattern.permute.xlu0 1
        %778 = vperm.xlu0 %777, %v386
        %v779 = vpop.permute.xlu0 %778
        %781 = vset.pattern.permute.xlu0 1
        %782 = vperm.xlu0 %781, %v387
        %v783 = vpop.permute.xlu0 %782
        %785 = vset.pattern.permute.xlu0 1
        %786 = vperm.xlu0 %785, %v388
        %v787 = vpop.permute.xlu0 %786
        %789 = vset.pattern.permute.xlu0 1
        %790 = vperm.xlu0 %789, %v389
        %v791 = vpop.permute.xlu0 %790
        %793 = vset.pattern.permute.xlu0 1
        %794 = vperm.xlu0 %793, %v390
        %v795 = vpop.permute.xlu0 %794
        %797 = vset.pattern.permute.xlu0 1
        %798 = vperm.xlu0 %797, %v391
        %v799 = vpop.permute.xlu0 %798
        %801 = vset.pattern.permute.xlu0 1
        %802 = vperm.xlu0 %801, %v392
        %v803 = vpop.permute.xlu0 %802
        %805 = vset.pattern.permute.xlu0 1
        %806 = vperm.xlu0 %805, %v393
        %v807 = vpop.permute.xlu0 %806
        %809 = vset.pattern.permute.xlu0 1
        %810 = vperm.xlu0 %809, %v394
        %v811 = vpop.permute.xlu0 %810
        %813 = vset.pattern.permute.xlu0 1
        %814 = vperm.xlu0 %813, %v395
        %v815 = vpop.permute.xlu0 %814
        %817 = vset.pattern.permute.xlu0 1
        %818 = vperm.xlu0 %817, %v396
        %v819 = vpop.permute.xlu0 %818
        %821 = vset.pattern.permute.xlu0 1
        %822 = vperm.xlu0 %821, %v397
        %v823 = vpop.permute.xlu0 %822
        %825 = vset.pattern.permute.xlu0 1
        %826 = vperm.xlu0 %825, %v398
        %v827 = vpop.permute.xlu0 %826
        %829 = vset.pattern.permute.xlu0 1
        %830 = vperm.xlu0 %829, %v399
        %v831 = vpop.permute.xlu0 %830
        %833 = vset.pattern.permute.xlu0 1
        %834 = vperm.xlu0 %833, %v400
        %v835 = vpop.permute.xlu0 %834
        %vm837 = vcmp.eq.f32.partialorder %v692, %v775
        %vm838 = vcmp.eq.f32.partialorder %v692, %v779
        %vm839 = vcmp.eq.f32.partialorder %v692, %v783
        %vm840 = vcmp.eq.f32.partialorder %v692, %v787
        %vm841 = vcmp.eq.f32.partialorder %v692, %v791
        %vm842 = vcmp.eq.f32.partialorder %v692, %v795
        %vm843 = vcmp.eq.f32.partialorder %v692, %v799
        %vm844 = vcmp.eq.f32.partialorder %v692, %v803
        %vm845 = vcmp.eq.f32.partialorder %v692, %v807
        %vm846 = vcmp.eq.f32.partialorder %v692, %v811
        %vm847 = vcmp.eq.f32.partialorder %v692, %v815
        %vm848 = vcmp.eq.f32.partialorder %v692, %v819
        %vm849 = vcmp.eq.f32.partialorder %v692, %v823
        %vm850 = vcmp.eq.f32.partialorder %v692, %v827
        %vm851 = vcmp.eq.f32.partialorder %v692, %v831
        %vm852 = vcmp.eq.f32.partialorder %v692, %v835
        %853 = vset.pattern.permute.xlu0 1
        %854 = vperm.xlu0 %853, %v253
        %v855 = vpop.permute.xlu0 %854
        %857 = vset.pattern.permute.xlu0 1
        %858 = vperm.xlu0 %857, %v254
        %v859 = vpop.permute.xlu0 %858
        %861 = vset.pattern.permute.xlu0 1
        %862 = vperm.xlu0 %861, %v255
        %v863 = vpop.permute.xlu0 %862
        %865 = vset.pattern.permute.xlu0 1
        %866 = vperm.xlu0 %865, %v256
        %v867 = vpop.permute.xlu0 %866
        %869 = vset.pattern.permute.xlu0 1
        %870 = vperm.xlu0 %869, %v257
        %v871 = vpop.permute.xlu0 %870
        %873 = vset.pattern.permute.xlu0 1
        %874 = vperm.xlu0 %873, %v258
        %v875 = vpop.permute.xlu0 %874
        %877 = vset.pattern.permute.xlu0 1
        %878 = vperm.xlu0 %877, %v259
        %v879 = vpop.permute.xlu0 %878
        %881 = vset.pattern.permute.xlu0 1
        %882 = vperm.xlu0 %881, %v260
        %v883 = vpop.permute.xlu0 %882
        %885 = vset.pattern.permute.xlu0 1
        %886 = vperm.xlu0 %885, %v261
        %v887 = vpop.permute.xlu0 %886
        %889 = vset.pattern.permute.xlu0 1
        %890 = vperm.xlu0 %889, %v262
        %v891 = vpop.permute.xlu0 %890
        %893 = vset.pattern.permute.xlu0 1
        %894 = vperm.xlu0 %893, %v263
        %v895 = vpop.permute.xlu0 %894
        %897 = vset.pattern.permute.xlu0 1
        %898 = vperm.xlu0 %897, %v264
        %v899 = vpop.permute.xlu0 %898
        %901 = vset.pattern.permute.xlu0 1
        %902 = vperm.xlu0 %901, %v265
        %v903 = vpop.permute.xlu0 %902
        %905 = vset.pattern.permute.xlu0 1
        %906 = vperm.xlu0 %905, %v266
        %v907 = vpop.permute.xlu0 %906
        %909 = vset.pattern.permute.xlu0 1
        %910 = vperm.xlu0 %909, %v267
        %v911 = vpop.permute.xlu0 %910
        %913 = vset.pattern.permute.xlu0 1
        %914 = vperm.xlu0 %913, %v268
        %v915 = vpop.permute.xlu0 %914
        %v917 = vsel %vm837, %v855, 0.0
        %v918 = vsel %vm838, %v859, 0.0
        %v919 = vsel %vm839, %v863, 0.0
        %v920 = vsel %vm840, %v867, 0.0
        %v921 = vsel %vm841, %v871, 0.0
        %v922 = vsel %vm842, %v875, 0.0
        %v923 = vsel %vm843, %v879, 0.0
        %v924 = vsel %vm844, %v883, 0.0
        %v925 = vsel %vm845, %v887, 0.0
        %v926 = vsel %vm846, %v891, 0.0
        %v927 = vsel %vm847, %v895, 0.0
        %v928 = vsel %vm848, %v899, 0.0
        %v929 = vsel %vm849, %v903, 0.0
        %v930 = vsel %vm850, %v907, 0.0
        %v931 = vsel %vm851, %v911, 0.0
        %v932 = vsel %vm852, %v915, 0.0
        %933 = vset.pattern.permute.xlu0 1
        %934 = vperm.xlu0 %933, %v369
        %v935 = vpop.permute.xlu0 %934
        %937 = vset.pattern.permute.xlu0 1
        %938 = vperm.xlu0 %937, %v370
        %v939 = vpop.permute.xlu0 %938
        %941 = vset.pattern.permute.xlu0 1
        %942 = vperm.xlu0 %941, %v371
        %v943 = vpop.permute.xlu0 %942
        %945 = vset.pattern.permute.xlu0 1
        %946 = vperm.xlu0 %945, %v372
        %v947 = vpop.permute.xlu0 %946
        %949 = vset.pattern.permute.xlu0 1
        %950 = vperm.xlu0 %949, %v373
        %v951 = vpop.permute.xlu0 %950
        %953 = vset.pattern.permute.xlu0 1
        %954 = vperm.xlu0 %953, %v374
        %v955 = vpop.permute.xlu0 %954
        %957 = vset.pattern.permute.xlu0 1
        %958 = vperm.xlu0 %957, %v375
        %v959 = vpop.permute.xlu0 %958
        %961 = vset.pattern.permute.xlu0 1
        %962 = vperm.xlu0 %961, %v376
        %v963 = vpop.permute.xlu0 %962
        %965 = vset.pattern.permute.xlu0 1
        %966 = vperm.xlu0 %965, %v377
        %v967 = vpop.permute.xlu0 %966
        %969 = vset.pattern.permute.xlu0 1
        %970 = vperm.xlu0 %969, %v378
        %v971 = vpop.permute.xlu0 %970
        %973 = vset.pattern.permute.xlu0 1
        %974 = vperm.xlu0 %973, %v379
        %v975 = vpop.permute.xlu0 %974
        %977 = vset.pattern.permute.xlu0 1
        %978 = vperm.xlu0 %977, %v380
        %v979 = vpop.permute.xlu0 %978
        %981 = vset.pattern.permute.xlu0 1
        %982 = vperm.xlu0 %981, %v381
        %v983 = vpop.permute.xlu0 %982
        %985 = vset.pattern.permute.xlu0 1
        %986 = vperm.xlu0 %985, %v382
        %v987 = vpop.permute.xlu0 %986
        %989 = vset.pattern.permute.xlu0 1
        %990 = vperm.xlu0 %989, %v383
        %v991 = vpop.permute.xlu0 %990
        %993 = vset.pattern.permute.xlu0 1
        %994 = vperm.xlu0 %993, %v384
        %v995 = vpop.permute.xlu0 %994
        %v997 = vsel %vm757, %v935, %v917
        %v998 = vsel %vm758, %v939, %v918
        %v999 = vsel %vm759, %v943, %v919
        %v1000 = vsel %vm760, %v947, %v920
        %v1001 = vsel %vm761, %v951, %v921
        %v1002 = vsel %vm762, %v955, %v922
        %v1003 = vsel %vm763, %v959, %v923
        %v1004 = vsel %vm764, %v963, %v924
        %v1005 = vsel %vm765, %v967, %v925
        %v1006 = vsel %vm766, %v971, %v926
        %v1007 = vsel %vm767, %v975, %v927
        %v1008 = vsel %vm768, %v979, %v928
        %v1009 = vsel %vm769, %v983, %v929
        %v1010 = vsel %vm770, %v987, %v930
        %v1011 = vsel %vm771, %v991, %v931
        %v1012 = vsel %vm772, %v995, %v932
        %v1013 = vmul.f32 %v673, %v997
        %v1014 = vmul.f32 %v674, %v998
        %v1015 = vmul.f32 %v675, %v999
        %v1016 = vmul.f32 %v676, %v1000
        %v1017 = vmul.f32 %v677, %v1001
        %v1018 = vmul.f32 %v678, %v1002
        %v1019 = vmul.f32 %v679, %v1003
        %v1020 = vmul.f32 %v680, %v1004
        %v1021 = vmul.f32 %v681, %v1005
        %v1022 = vmul.f32 %v682, %v1006
        %v1023 = vmul.f32 %v683, %v1007
        %v1024 = vmul.f32 %v684, %v1008
        %v1025 = vmul.f32 %v685, %v1009
        %v1026 = vmul.f32 %v686, %v1010
        %v1027 = vmul.f32 %v687, %v1011
        %v1028 = vmul.f32 %v688, %v1012
        %v1029 = vld [vmem:[%s2] sm:$0xff]
        %v1030 = vld [vmem:[%s2 + $0x8] sm:$0xff]
        %v1031 = vld [vmem:[%s2 + $0x10] sm:$0xff]
        %v1032 = vld [vmem:[%s2 + $0x18] sm:$0xff]
        %v1033 = vld [vmem:[%s2 + $0x20] sm:$0xff]
        %v1034 = vld [vmem:[%s2 + $0x28] sm:$0xff]
        %v1035 = vld [vmem:[%s2 + $0x30] sm:$0xff]
        %v1036 = vld [vmem:[%s2 + $0x38] sm:$0xff]
        %v1037 = vld [vmem:[%s2 + $0x40] sm:$0xff]
        %v1038 = vld [vmem:[%s2 + $0x48] sm:$0xff]
        %v1039 = vld [vmem:[%s2 + $0x50] sm:$0xff]
        %v1040 = vld [vmem:[%s2 + $0x58] sm:$0xff]
        %v1041 = vld [vmem:[%s2 + $0x60] sm:$0xff]
        %v1042 = vld [vmem:[%s2 + $0x68] sm:$0xff]
        %v1043 = vld [vmem:[%s2 + $0x70] sm:$0xff]
        %v1044 = vld [vmem:[%s2 + $0x78] sm:$0xff]
        %1045 = vmatprep.subr.mxu0 0.0
        %v1046 = vand.u32 %v1029, 4294901760
        %1047 = vmatpush1.msra.mxu0 %v1046
        %1048 = vmatprep.subr.mxu0 0.0
        %v1049 = vand.u32 %v1030, 4294901760
        %1050 = vmatpush1.msra.mxu0 %v1049
        %1051 = vmatprep.subr.mxu0 0.0
        %v1052 = vand.u32 %v1031, 4294901760
        %1053 = vmatpush1.msra.mxu0 %v1052
        %1054 = vmatprep.subr.mxu0 0.0
        %v1055 = vand.u32 %v1032, 4294901760
        %1056 = vmatpush1.msra.mxu0 %v1055
        %1057 = vmatprep.subr.mxu0 0.0
        %v1058 = vand.u32 %v1033, 4294901760
        %1059 = vmatpush1.msra.mxu0 %v1058
        %1060 = vmatprep.subr.mxu0 0.0
        %v1061 = vand.u32 %v1034, 4294901760
        %1062 = vmatpush1.msra.mxu0 %v1061
        %1063 = vmatprep.subr.mxu0 0.0
        %v1064 = vand.u32 %v1035, 4294901760
        %1065 = vmatpush1.msra.mxu0 %v1064
        %1066 = vmatprep.subr.mxu0 0.0
        %v1067 = vand.u32 %v1036, 4294901760
        %1068 = vmatpush1.msra.mxu0 %v1067
        %1069 = vmatprep.subr.mxu0 0.0
        %v1070 = vand.u32 %v1037, 4294901760
        %1071 = vmatpush1.msra.mxu0 %v1070
        %1072 = vmatprep.subr.mxu0 0.0
        %v1073 = vand.u32 %v1038, 4294901760
        %1074 = vmatpush1.msra.mxu0 %v1073
        %1075 = vmatprep.subr.mxu0 0.0
        %v1076 = vand.u32 %v1039, 4294901760
        %1077 = vmatpush1.msra.mxu0 %v1076
        %1078 = vmatprep.subr.mxu0 0.0
        %v1079 = vand.u32 %v1040, 4294901760
        %1080 = vmatpush1.msra.mxu0 %v1079
        %1081 = vmatprep.subr.mxu0 0.0
        %v1082 = vand.u32 %v1041, 4294901760
        %1083 = vmatpush1.msra.mxu0 %v1082
        %1084 = vmatprep.subr.mxu0 0.0
        %v1085 = vand.u32 %v1042, 4294901760
        %1086 = vmatpush1.msra.mxu0 %v1085
        %1087 = vmatprep.subr.mxu0 0.0
        %v1088 = vand.u32 %v1043, 4294901760
        %1089 = vmatpush1.msra.mxu0 %v1088
        %1090 = vmatprep.subr.mxu0 0.0
        %v1091 = vand.u32 %v1044, 4294901760
        %1092 = vmatpush1.msra.mxu0 %v1091
        %1093 = vmatprep.subr.mxu0 0.0
        %1094 = vmatpush1.msra.mxu0 0.0
        %1095 = vmatprep.subr.mxu0 0.0
        %1096 = vmatpush1.msra.mxu0 0.0
        %1097 = vmatprep.subr.mxu0 0.0
        %1098 = vmatpush1.msra.mxu0 0.0
        %1099 = vmatprep.subr.mxu0 0.0
        %1100 = vmatpush1.msra.mxu0 0.0
        %1101 = vmatprep.subr.mxu0 0.0
        %1102 = vmatpush1.msra.mxu0 0.0
        %1103 = vmatprep.subr.mxu0 0.0
        %1104 = vmatpush1.msra.mxu0 0.0
        %1105 = vmatprep.subr.mxu0 0.0
        %1106 = vmatpush1.msra.mxu0 0.0
        %1107 = vmatprep.subr.mxu0 0.0
        %1108 = vmatpush1.msra.mxu0 0.0
        %1109 = vmatprep.subr.mxu0 0.0
        %1110 = vmatpush1.msra.mxu0 0.0
        %1111 = vmatprep.subr.mxu0 0.0
        %1112 = vmatpush1.msra.mxu0 0.0
        %1113 = vmatprep.subr.mxu0 0.0
        %1114 = vmatpush1.msra.mxu0 0.0
        %1115 = vmatprep.subr.mxu0 0.0
        %1116 = vmatpush1.msra.mxu0 0.0
        %1117 = vmatprep.subr.mxu0 0.0
        %1118 = vmatpush1.msra.mxu0 0.0
        %1119 = vmatprep.subr.mxu0 0.0
        %1120 = vmatpush1.msra.mxu0 0.0
        %1121 = vmatprep.subr.mxu0 0.0
        %1122 = vmatpush1.msra.mxu0 0.0
        %1123 = vmatprep.subr.mxu0 0.0
        %1124 = vmatpush1.msra.mxu0 0.0
        %1125 = vmatprep.mubr.f32.mxu0 0.0
        %v1126 = vand.u32 %v1013, 4294901760
        %v1127 = vsub.f32 %v1013, %v1126
        %v1128 = vand.u32 %v1127, 4294901760
        %v1129 = vsub.f32 %v1127, %v1128
        %v1130 = vand.u32 %v1129, 4294901760
        %1131 = vmatmul.mubr.f32.gmra.mrb[0].mxu0 %v1130
        %v1132 = vpop.f32.mrb[0].mxu0
        %v1133 = vadd.f32 0.0, %v1132
        %v1134 = vpop.f32.mrb[0].mxu0
        %1135 = vmatprep.mubr.f32.mxu0 0.0
        %v1136 = vand.u32 %v1014, 4294901760
        %v1137 = vsub.f32 %v1014, %v1136
        %v1138 = vand.u32 %v1137, 4294901760
        %v1139 = vsub.f32 %v1137, %v1138
        %v1140 = vand.u32 %v1139, 4294901760
        %1141 = vmatmul.mubr.f32.gmra.mrb[0].mxu0 %v1140
        %v1142 = vpop.f32.mrb[0].mxu0
        %v1143 = vadd.f32 0.0, %v1142
        %v1144 = vpop.f32.mrb[0].mxu0
        %1145 = vmatprep.mubr.f32.mxu0 0.0
        %v1146 = vand.u32 %v1015, 4294901760
        %v1147 = vsub.f32 %v1015, %v1146
        %v1148 = vand.u32 %v1147, 4294901760
        %v1149 = vsub.f32 %v1147, %v1148
        %v1150 = vand.u32 %v1149, 4294901760
        %1151 = vmatmul.mubr.f32.gmra.mrb[0].mxu0 %v1150
        %v1152 = vpop.f32.mrb[0].mxu0
        %v1153 = vadd.f32 0.0, %v1152
        %v1154 = vpop.f32.mrb[0].mxu0
        %1155 = vmatprep.mubr.f32.mxu0 0.0
        %v1156 = vand.u32 %v1016, 4294901760
        %v1157 = vsub.f32 %v1016, %v1156
        %v1158 = vand.u32 %v1157, 4294901760
        %v1159 = vsub.f32 %v1157, %v1158
        %v1160 = vand.u32 %v1159, 4294901760
        %1161 = vmatmul.mubr.f32.gmra.mrb[0].mxu0 %v1160
        %v1162 = vpop.f32.mrb[0].mxu0
        %v1163 = vadd.f32 0.0, %v1162
        %v1164 = vpop.f32.mrb[0].mxu0
        %1165 = vmatprep.mubr.f32.mxu0 0.0
        %v1166 = vand.u32 %v1017, 4294901760
        %v1167 = vsub.f32 %v1017, %v1166
        %v1168 = vand.u32 %v1167, 4294901760
        %v1169 = vsub.f32 %v1167, %v1168
        %v1170 = vand.u32 %v1169, 4294901760
        %1171 = vmatmul.mubr.f32.gmra.mrb[0].mxu0 %v1170
        %v1172 = vpop.f32.mrb[0].mxu0
        %v1173 = vadd.f32 0.0, %v1172
        %v1174 = vpop.f32.mrb[0].mxu0
        %1175 = vmatprep.mubr.f32.mxu0 0.0
        %v1176 = vand.u32 %v1018, 4294901760
        %v1177 = vsub.f32 %v1018, %v1176
        %v1178 = vand.u32 %v1177, 4294901760
        %v1179 = vsub.f32 %v1177, %v1178
        %v1180 = vand.u32 %v1179, 4294901760
        %1181 = vmatmul.mubr.f32.gmra.mrb[0].mxu0 %v1180
        %v1182 = vpop.f32.mrb[0].mxu0
        %v1183 = vadd.f32 0.0, %v1182
        %v1184 = vpop.f32.mrb[0].mxu0
        %1185 = vmatprep.mubr.f32.mxu0 0.0
        %v1186 = vand.u32 %v1019, 4294901760
        %v1187 = vsub.f32 %v1019, %v1186
        %v1188 = vand.u32 %v1187, 4294901760
        %v1189 = vsub.f32 %v1187, %v1188
        %v1190 = vand.u32 %v1189, 4294901760
        %1191 = vmatmul.mubr.f32.gmra.mrb[0].mxu0 %v1190
        %v1192 = vpop.f32.mrb[0].mxu0
        %v1193 = vadd.f32 0.0, %v1192
        %v1194 = vpop.f32.mrb[0].mxu0
        %1195 = vmatprep.mubr.f32.mxu0 0.0
        %v1196 = vand.u32 %v1020, 4294901760
        %v1197 = vsub.f32 %v1020, %v1196
        %v1198 = vand.u32 %v1197, 4294901760
        %v1199 = vsub.f32 %v1197, %v1198
        %v1200 = vand.u32 %v1199, 4294901760
        %1201 = vmatmul.mubr.f32.gmra.mrb[0].mxu0 %v1200
        %v1202 = vpop.f32.mrb[0].mxu0
        %v1203 = vadd.f32 0.0, %v1202
        %v1204 = vpop.f32.mrb[0].mxu0
        %1205 = vmatprep.mubr.f32.mxu0 0.0
        %v1206 = vand.u32 %v1021, 4294901760
        %v1207 = vsub.f32 %v1021, %v1206
        %v1208 = vand.u32 %v1207, 4294901760
        %v1209 = vsub.f32 %v1207, %v1208
        %v1210 = vand.u32 %v1209, 4294901760
        %1211 = vmatmul.mubr.f32.gmra.mrb[0].mxu0 %v1210
        %v1212 = vpop.f32.mrb[0].mxu0
        %v1213 = vadd.f32 0.0, %v1212
        %v1214 = vpop.f32.mrb[0].mxu0
        %1215 = vmatprep.mubr.f32.mxu0 0.0
        %v1216 = vand.u32 %v1022, 4294901760
        %v1217 = vsub.f32 %v1022, %v1216
        %v1218 = vand.u32 %v1217, 4294901760
        %v1219 = vsub.f32 %v1217, %v1218
        %v1220 = vand.u32 %v1219, 4294901760
        %1221 = vmatmul.mubr.f32.gmra.mrb[0].mxu0 %v1220
        %v1222 = vpop.f32.mrb[0].mxu0
        %v1223 = vadd.f32 0.0, %v1222
        %v1224 = vpop.f32.mrb[0].mxu0
        %1225 = vmatprep.mubr.f32.mxu0 0.0
        %v1226 = vand.u32 %v1023, 4294901760
        %v1227 = vsub.f32 %v1023, %v1226
        %v1228 = vand.u32 %v1227, 4294901760
        %v1229 = vsub.f32 %v1227, %v1228
        %v1230 = vand.u32 %v1229, 4294901760
        %1231 = vmatmul.mubr.f32.gmra.mrb[0].mxu0 %v1230
        %v1232 = vpop.f32.mrb[0].mxu0
        %v1233 = vadd.f32 0.0, %v1232
        %v1234 = vpop.f32.mrb[0].mxu0
        %1235 = vmatprep.mubr.f32.mxu0 0.0
        %v1236 = vand.u32 %v1024, 4294901760
        %v1237 = vsub.f32 %v1024, %v1236
        %v1238 = vand.u32 %v1237, 4294901760
        %v1239 = vsub.f32 %v1237, %v1238
        %v1240 = vand.u32 %v1239, 4294901760
        %1241 = vmatmul.mubr.f32.gmra.mrb[0].mxu0 %v1240
        %v1242 = vpop.f32.mrb[0].mxu0
        %v1243 = vadd.f32 0.0, %v1242
        %v1244 = vpop.f32.mrb[0].mxu0
        %1245 = vmatprep.mubr.f32.mxu0 0.0
        %v1246 = vand.u32 %v1025, 4294901760
        %v1247 = vsub.f32 %v1025, %v1246
        %v1248 = vand.u32 %v1247, 4294901760
        %v1249 = vsub.f32 %v1247, %v1248
        %v1250 = vand.u32 %v1249, 4294901760
        %1251 = vmatmul.mubr.f32.gmra.mrb[0].mxu0 %v1250
        %v1252 = vpop.f32.mrb[0].mxu0
        %v1253 = vadd.f32 0.0, %v1252
        %v1254 = vpop.f32.mrb[0].mxu0
        %1255 = vmatprep.mubr.f32.mxu0 0.0
        %v1256 = vand.u32 %v1026, 4294901760
        %v1257 = vsub.f32 %v1026, %v1256
        %v1258 = vand.u32 %v1257, 4294901760
        %v1259 = vsub.f32 %v1257, %v1258
        %v1260 = vand.u32 %v1259, 4294901760
        %1261 = vmatmul.mubr.f32.gmra.mrb[0].mxu0 %v1260
        %v1262 = vpop.f32.mrb[0].mxu0
        %v1263 = vadd.f32 0.0, %v1262
        %v1264 = vpop.f32.mrb[0].mxu0
        %1265 = vmatprep.mubr.f32.mxu0 0.0
        %v1266 = vand.u32 %v1027, 4294901760
        %v1267 = vsub.f32 %v1027, %v1266
        %v1268 = vand.u32 %v1267, 4294901760
        %v1269 = vsub.f32 %v1267, %v1268
        %v1270 = vand.u32 %v1269, 4294901760
        %1271 = vmatmul.mubr.f32.gmra.mrb[0].mxu0 %v1270
        %v1272 = vpop.f32.mrb[0].mxu0
        %v1273 = vadd.f32 0.0, %v1272
        %v1274 = vpop.f32.mrb[0].mxu0
        %1275 = vmatprep.mubr.f32.mxu0 0.0
        %v1276 = vand.u32 %v1028, 4294901760
        %v1277 = vsub.f32 %v1028, %v1276
        %v1278 = vand.u32 %v1277, 4294901760
        %v1279 = vsub.f32 %v1277, %v1278
        %v1280 = vand.u32 %v1279, 4294901760
        %1281 = vmatmul.mubr.f32.gmra.mrb[0].mxu0 %v1280
        %v1282 = vpop.f32.mrb[0].mxu0
        %v1283 = vadd.f32 0.0, %v1282
        %v1284 = vpop.f32.mrb[0].mxu0
        %1285 = vdwg.mxu0
        %1286 = vmatprep.subr.mxu0 0.0
        %v1287 = vand.u32 %v1029, 4294901760
        %v1288 = vsub.f32 %v1029, %v1287
        %v1289 = vand.u32 %v1288, 4294901760
        %v1290 = vsub.f32 %v1288, %v1289
        %v1291 = vand.u32 %v1290, 4294901760
        %1292 = vmatpush1.msra.mxu0 %v1291
        %1293 = vmatprep.subr.mxu0 0.0
        %v1294 = vand.u32 %v1030, 4294901760
        %v1295 = vsub.f32 %v1030, %v1294
        %v1296 = vand.u32 %v1295, 4294901760
        %v1297 = vsub.f32 %v1295, %v1296
        %v1298 = vand.u32 %v1297, 4294901760
        %1299 = vmatpush1.msra.mxu0 %v1298
        %1300 = vmatprep.subr.mxu0 0.0
        %v1301 = vand.u32 %v1031, 4294901760
        %v1302 = vsub.f32 %v1031, %v1301
        %v1303 = vand.u32 %v1302, 4294901760
        %v1304 = vsub.f32 %v1302, %v1303
        %v1305 = vand.u32 %v1304, 4294901760
        %1306 = vmatpush1.msra.mxu0 %v1305
        %1307 = vmatprep.subr.mxu0 0.0
        %v1308 = vand.u32 %v1032, 4294901760
        %v1309 = vsub.f32 %v1032, %v1308
        %v1310 = vand.u32 %v1309, 4294901760
        %v1311 = vsub.f32 %v1309, %v1310
        %v1312 = vand.u32 %v1311, 4294901760
        %1313 = vmatpush1.msra.mxu0 %v1312
        %1314 = vmatprep.subr.mxu0 0.0
        %v1315 = vand.u32 %v1033, 4294901760
        %v1316 = vsub.f32 %v1033, %v1315
        %v1317 = vand.u32 %v1316, 4294901760
        %v1318 = vsub.f32 %v1316, %v1317
        %v1319 = vand.u32 %v1318, 4294901760
        %1320 = vmatpush1.msra.mxu0 %v1319
        %1321 = vmatprep.subr.mxu0 0.0
        %v1322 = vand.u32 %v1034, 4294901760
        %v1323 = vsub.f32 %v1034, %v1322
        %v1324 = vand.u32 %v1323, 4294901760
        %v1325 = vsub.f32 %v1323, %v1324
        %v1326 = vand.u32 %v1325, 4294901760
        %1327 = vmatpush1.msra.mxu0 %v1326
        %1328 = vmatprep.subr.mxu0 0.0
        %v1329 = vand.u32 %v1035, 4294901760
        %v1330 = vsub.f32 %v1035, %v1329
        %v1331 = vand.u32 %v1330, 4294901760
        %v1332 = vsub.f32 %v1330, %v1331
        %v1333 = vand.u32 %v1332, 4294901760
        %1334 = vmatpush1.msra.mxu0 %v1333
        %1335 = vmatprep.subr.mxu0 0.0
        %v1336 = vand.u32 %v1036, 4294901760
        %v1337 = vsub.f32 %v1036, %v1336
        %v1338 = vand.u32 %v1337, 4294901760
        %v1339 = vsub.f32 %v1337, %v1338
        %v1340 = vand.u32 %v1339, 4294901760
        %1341 = vmatpush1.msra.mxu0 %v1340
        %1342 = vmatprep.subr.mxu0 0.0
        %v1343 = vand.u32 %v1037, 4294901760
        %v1344 = vsub.f32 %v1037, %v1343
        %v1345 = vand.u32 %v1344, 4294901760
        %v1346 = vsub.f32 %v1344, %v1345
        %v1347 = vand.u32 %v1346, 4294901760
        %1348 = vmatpush1.msra.mxu0 %v1347
        %1349 = vmatprep.subr.mxu0 0.0
        %v1350 = vand.u32 %v1038, 4294901760
        %v1351 = vsub.f32 %v1038, %v1350
        %v1352 = vand.u32 %v1351, 4294901760
        %v1353 = vsub.f32 %v1351, %v1352
        %v1354 = vand.u32 %v1353, 4294901760
        %1355 = vmatpush1.msra.mxu0 %v1354
        %1356 = vmatprep.subr.mxu0 0.0
        %v1357 = vand.u32 %v1039, 4294901760
        %v1358 = vsub.f32 %v1039, %v1357
        %v1359 = vand.u32 %v1358, 4294901760
        %v1360 = vsub.f32 %v1358, %v1359
        %v1361 = vand.u32 %v1360, 4294901760
        %1362 = vmatpush1.msra.mxu0 %v1361
        %1363 = vmatprep.subr.mxu0 0.0
        %v1364 = vand.u32 %v1040, 4294901760
        %v1365 = vsub.f32 %v1040, %v1364
        %v1366 = vand.u32 %v1365, 4294901760
        %v1367 = vsub.f32 %v1365, %v1366
        %v1368 = vand.u32 %v1367, 4294901760
        %1369 = vmatpush1.msra.mxu0 %v1368
        %1370 = vmatprep.subr.mxu0 0.0
        %v1371 = vand.u32 %v1041, 4294901760
        %v1372 = vsub.f32 %v1041, %v1371
        %v1373 = vand.u32 %v1372, 4294901760
        %v1374 = vsub.f32 %v1372, %v1373
        %v1375 = vand.u32 %v1374, 4294901760
        %1376 = vmatpush1.msra.mxu0 %v1375
        %1377 = vmatprep.subr.mxu0 0.0
        %v1378 = vand.u32 %v1042, 4294901760
        %v1379 = vsub.f32 %v1042, %v1378
        %v1380 = vand.u32 %v1379, 4294901760
        %v1381 = vsub.f32 %v1379, %v1380
        %v1382 = vand.u32 %v1381, 4294901760
        %1383 = vmatpush1.msra.mxu0 %v1382
        %1384 = vmatprep.subr.mxu0 0.0
        %v1385 = vand.u32 %v1043, 4294901760
        %v1386 = vsub.f32 %v1043, %v1385
        %v1387 = vand.u32 %v1386, 4294901760
        %v1388 = vsub.f32 %v1386, %v1387
        %v1389 = vand.u32 %v1388, 4294901760
        %1390 = vmatpush1.msra.mxu0 %v1389
        %1391 = vmatprep.subr.mxu0 0.0
        %v1392 = vand.u32 %v1044, 4294901760
        %v1393 = vsub.f32 %v1044, %v1392
        %v1394 = vand.u32 %v1393, 4294901760
        %v1395 = vsub.f32 %v1393, %v1394
        %v1396 = vand.u32 %v1395, 4294901760
        %1397 = vmatpush1.msra.mxu0 %v1396
        %1398 = vmatprep.subr.mxu0 0.0
        %1399 = vmatpush1.msra.mxu0 0.0
        %1400 = vmatprep.subr.mxu0 0.0
        %1401 = vmatpush1.msra.mxu0 0.0
        %1402 = vmatprep.subr.mxu0 0.0
        %1403 = vmatpush1.msra.mxu0 0.0
        %1404 = vmatprep.subr.mxu0 0.0
        %1405 = vmatpush1.msra.mxu0 0.0
        %1406 = vmatprep.subr.mxu0 0.0
        %1407 = vmatpush1.msra.mxu0 0.0
        %1408 = vmatprep.subr.mxu0 0.0
        %1409 = vmatpush1.msra.mxu0 0.0
        %1410 = vmatprep.subr.mxu0 0.0
        %1411 = vmatpush1.msra.mxu0 0.0
        %1412 = vmatprep.subr.mxu0 0.0
        %1413 = vmatpush1.msra.mxu0 0.0
        %1414 = vmatprep.subr.mxu0 0.0
        %1415 = vmatpush1.msra.mxu0 0.0
        %1416 = vmatprep.subr.mxu0 0.0
        %1417 = vmatpush1.msra.mxu0 0.0
        %1418 = vmatprep.subr.mxu0 0.0
        %1419 = vmatpush1.msra.mxu0 0.0
        %1420 = vmatprep.subr.mxu0 0.0
        %1421 = vmatpush1.msra.mxu0 0.0
        %1422 = vmatprep.subr.mxu0 0.0
        %1423 = vmatpush1.msra.mxu0 0.0
        %1424 = vmatprep.subr.mxu0 0.0
        %1425 = vmatpush1.msra.mxu0 0.0
        %1426 = vmatprep.subr.mxu0 0.0
        %1427 = vmatpush1.msra.mxu0 0.0
        %1428 = vmatprep.subr.mxu0 0.0
        %1429 = vmatpush1.msra.mxu0 0.0
        %1430 = vmatprep.mubr.f32.mxu0 0.0
        %v1431 = vand.u32 %v1013, 4294901760
        %1432 = vmatmul.mubr.f32.gmra.mrb[0].mxu0 %v1431
        %v1433 = vpop.f32.mrb[0].mxu0
        %v1434 = vadd.f32 %v1133, %v1433
        %v1435 = vpop.f32.mrb[0].mxu0
        %1436 = vmatprep.mubr.f32.mxu0 0.0
        %v1437 = vand.u32 %v1014, 4294901760
        %1438 = vmatmul.mubr.f32.gmra.mrb[0].mxu0 %v1437
        %v1439 = vpop.f32.mrb[0].mxu0
        %v1440 = vadd.f32 %v1143, %v1439
        %v1441 = vpop.f32.mrb[0].mxu0
        %1442 = vmatprep.mubr.f32.mxu0 0.0
        %v1443 = vand.u32 %v1015, 4294901760
        %1444 = vmatmul.mubr.f32.gmra.mrb[0].mxu0 %v1443
        %v1445 = vpop.f32.mrb[0].mxu0
        %v1446 = vadd.f32 %v1153, %v1445
        %v1447 = vpop.f32.mrb[0].mxu0
        %1448 = vmatprep.mubr.f32.mxu0 0.0
        %v1449 = vand.u32 %v1016, 4294901760
        %1450 = vmatmul.mubr.f32.gmra.mrb[0].mxu0 %v1449
        %v1451 = vpop.f32.mrb[0].mxu0
        %v1452 = vadd.f32 %v1163, %v1451
        %v1453 = vpop.f32.mrb[0].mxu0
        %1454 = vmatprep.mubr.f32.mxu0 0.0
        %v1455 = vand.u32 %v1017, 4294901760
        %1456 = vmatmul.mubr.f32.gmra.mrb[0].mxu0 %v1455
        %v1457 = vpop.f32.mrb[0].mxu0
        %v1458 = vadd.f32 %v1173, %v1457
        %v1459 = vpop.f32.mrb[0].mxu0
        %1460 = vmatprep.mubr.f32.mxu0 0.0
        %v1461 = vand.u32 %v1018, 4294901760
        %1462 = vmatmul.mubr.f32.gmra.mrb[0].mxu0 %v1461
        %v1463 = vpop.f32.mrb[0].mxu0
        %v1464 = vadd.f32 %v1183, %v1463
        %v1465 = vpop.f32.mrb[0].mxu0
        %1466 = vmatprep.mubr.f32.mxu0 0.0
        %v1467 = vand.u32 %v1019, 4294901760
        %1468 = vmatmul.mubr.f32.gmra.mrb[0].mxu0 %v1467
        %v1469 = vpop.f32.mrb[0].mxu0
        %v1470 = vadd.f32 %v1193, %v1469
        %v1471 = vpop.f32.mrb[0].mxu0
        %1472 = vmatprep.mubr.f32.mxu0 0.0
        %v1473 = vand.u32 %v1020, 4294901760
        %1474 = vmatmul.mubr.f32.gmra.mrb[0].mxu0 %v1473
        %v1475 = vpop.f32.mrb[0].mxu0
        %v1476 = vadd.f32 %v1203, %v1475
        %v1477 = vpop.f32.mrb[0].mxu0
        %1478 = vmatprep.mubr.f32.mxu0 0.0
        %v1479 = vand.u32 %v1021, 4294901760
        %1480 = vmatmul.mubr.f32.gmra.mrb[0].mxu0 %v1479
        %v1481 = vpop.f32.mrb[0].mxu0
        %v1482 = vadd.f32 %v1213, %v1481
        %v1483 = vpop.f32.mrb[0].mxu0
        %1484 = vmatprep.mubr.f32.mxu0 0.0
        %v1485 = vand.u32 %v1022, 4294901760
        %1486 = vmatmul.mubr.f32.gmra.mrb[0].mxu0 %v1485
        %v1487 = vpop.f32.mrb[0].mxu0
        %v1488 = vadd.f32 %v1223, %v1487
        %v1489 = vpop.f32.mrb[0].mxu0
        %1490 = vmatprep.mubr.f32.mxu0 0.0
        %v1491 = vand.u32 %v1023, 4294901760
        %1492 = vmatmul.mubr.f32.gmra.mrb[0].mxu0 %v1491
        %v1493 = vpop.f32.mrb[0].mxu0
        %v1494 = vadd.f32 %v1233, %v1493
        %v1495 = vpop.f32.mrb[0].mxu0
        %1496 = vmatprep.mubr.f32.mxu0 0.0
        %v1497 = vand.u32 %v1024, 4294901760
        %1498 = vmatmul.mubr.f32.gmra.mrb[0].mxu0 %v1497
        %v1499 = vpop.f32.mrb[0].mxu0
        %v1500 = vadd.f32 %v1243, %v1499
        %v1501 = vpop.f32.mrb[0].mxu0
        %1502 = vmatprep.mubr.f32.mxu0 0.0
        %v1503 = vand.u32 %v1025, 4294901760
        %1504 = vmatmul.mubr.f32.gmra.mrb[0].mxu0 %v1503
        %v1505 = vpop.f32.mrb[0].mxu0
        %v1506 = vadd.f32 %v1253, %v1505
        %v1507 = vpop.f32.mrb[0].mxu0
        %1508 = vmatprep.mubr.f32.mxu0 0.0
        %v1509 = vand.u32 %v1026, 4294901760
        %1510 = vmatmul.mubr.f32.gmra.mrb[0].mxu0 %v1509
        %v1511 = vpop.f32.mrb[0].mxu0
        %v1512 = vadd.f32 %v1263, %v1511
        %v1513 = vpop.f32.mrb[0].mxu0
        %1514 = vmatprep.mubr.f32.mxu0 0.0
        %v1515 = vand.u32 %v1027, 4294901760
        %1516 = vmatmul.mubr.f32.gmra.mrb[0].mxu0 %v1515
        %v1517 = vpop.f32.mrb[0].mxu0
        %v1518 = vadd.f32 %v1273, %v1517
        %v1519 = vpop.f32.mrb[0].mxu0
        %1520 = vmatprep.mubr.f32.mxu0 0.0
        %v1521 = vand.u32 %v1028, 4294901760
        %1522 = vmatmul.mubr.f32.gmra.mrb[0].mxu0 %v1521
        %v1523 = vpop.f32.mrb[0].mxu0
        %v1524 = vadd.f32 %v1283, %v1523
        %v1525 = vpop.f32.mrb[0].mxu0
        %1526 = vdwg.mxu0
        %1527 = vmatprep.subr.mxu0 0.0
        %v1528 = vand.u32 %v1029, 4294901760
        %v1529 = vsub.f32 %v1029, %v1528
        %1530 = vmatpush1.msra.mxu0 %v1529
        %1531 = vmatprep.subr.mxu0 0.0
        %v1532 = vand.u32 %v1030, 4294901760
        %v1533 = vsub.f32 %v1030, %v1532
        %1534 = vmatpush1.msra.mxu0 %v1533
        %1535 = vmatprep.subr.mxu0 0.0
        %v1536 = vand.u32 %v1031, 4294901760
        %v1537 = vsub.f32 %v1031, %v1536
        %1538 = vmatpush1.msra.mxu0 %v1537
        %1539 = vmatprep.subr.mxu0 0.0
        %v1540 = vand.u32 %v1032, 4294901760
        %v1541 = vsub.f32 %v1032, %v1540
        %1542 = vmatpush1.msra.mxu0 %v1541
        %1543 = vmatprep.subr.mxu0 0.0
        %v1544 = vand.u32 %v1033, 4294901760
        %v1545 = vsub.f32 %v1033, %v1544
        %1546 = vmatpush1.msra.mxu0 %v1545
        %1547 = vmatprep.subr.mxu0 0.0
        %v1548 = vand.u32 %v1034, 4294901760
        %v1549 = vsub.f32 %v1034, %v1548
        %1550 = vmatpush1.msra.mxu0 %v1549
        %1551 = vmatprep.subr.mxu0 0.0
        %v1552 = vand.u32 %v1035, 4294901760
        %v1553 = vsub.f32 %v1035, %v1552
        %1554 = vmatpush1.msra.mxu0 %v1553
        %1555 = vmatprep.subr.mxu0 0.0
        %v1556 = vand.u32 %v1036, 4294901760
        %v1557 = vsub.f32 %v1036, %v1556
        %1558 = vmatpush1.msra.mxu0 %v1557
        %1559 = vmatprep.subr.mxu0 0.0
        %v1560 = vand.u32 %v1037, 4294901760
        %v1561 = vsub.f32 %v1037, %v1560
        %1562 = vmatpush1.msra.mxu0 %v1561
        %1563 = vmatprep.subr.mxu0 0.0
        %v1564 = vand.u32 %v1038, 4294901760
        %v1565 = vsub.f32 %v1038, %v1564
        %1566 = vmatpush1.msra.mxu0 %v1565
        %1567 = vmatprep.subr.mxu0 0.0
        %v1568 = vand.u32 %v1039, 4294901760
        %v1569 = vsub.f32 %v1039, %v1568
        %1570 = vmatpush1.msra.mxu0 %v1569
        %1571 = vmatprep.subr.mxu0 0.0
        %v1572 = vand.u32 %v1040, 4294901760
        %v1573 = vsub.f32 %v1040, %v1572
        %1574 = vmatpush1.msra.mxu0 %v1573
        %1575 = vmatprep.subr.mxu0 0.0
        %v1576 = vand.u32 %v1041, 4294901760
        %v1577 = vsub.f32 %v1041, %v1576
        %1578 = vmatpush1.msra.mxu0 %v1577
        %1579 = vmatprep.subr.mxu0 0.0
        %v1580 = vand.u32 %v1042, 4294901760
        %v1581 = vsub.f32 %v1042, %v1580
        %1582 = vmatpush1.msra.mxu0 %v1581
        %1583 = vmatprep.subr.mxu0 0.0
        %v1584 = vand.u32 %v1043, 4294901760
        %v1585 = vsub.f32 %v1043, %v1584
        %1586 = vmatpush1.msra.mxu0 %v1585
        %1587 = vmatprep.subr.mxu0 0.0
        %v1588 = vand.u32 %v1044, 4294901760
        %v1589 = vsub.f32 %v1044, %v1588
        %1590 = vmatpush1.msra.mxu0 %v1589
        %1591 = vmatprep.subr.mxu0 0.0
        %1592 = vmatpush1.msra.mxu0 0.0
        %1593 = vmatprep.subr.mxu0 0.0
        %1594 = vmatpush1.msra.mxu0 0.0
        %1595 = vmatprep.subr.mxu0 0.0
        %1596 = vmatpush1.msra.mxu0 0.0
        %1597 = vmatprep.subr.mxu0 0.0
        %1598 = vmatpush1.msra.mxu0 0.0
        %1599 = vmatprep.subr.mxu0 0.0
        %1600 = vmatpush1.msra.mxu0 0.0
        %1601 = vmatprep.subr.mxu0 0.0
        %1602 = vmatpush1.msra.mxu0 0.0
        %1603 = vmatprep.subr.mxu0 0.0
        %1604 = vmatpush1.msra.mxu0 0.0
        %1605 = vmatprep.subr.mxu0 0.0
        %1606 = vmatpush1.msra.mxu0 0.0
        %1607 = vmatprep.subr.mxu0 0.0
        %1608 = vmatpush1.msra.mxu0 0.0
        %1609 = vmatprep.subr.mxu0 0.0
        %1610 = vmatpush1.msra.mxu0 0.0
        %1611 = vmatprep.subr.mxu0 0.0
        %1612 = vmatpush1.msra.mxu0 0.0
        %1613 = vmatprep.subr.mxu0 0.0
        %1614 = vmatpush1.msra.mxu0 0.0
        %1615 = vmatprep.subr.mxu0 0.0
        %1616 = vmatpush1.msra.mxu0 0.0
        %1617 = vmatprep.subr.mxu0 0.0
        %1618 = vmatpush1.msra.mxu0 0.0
        %1619 = vmatprep.subr.mxu0 0.0
        %1620 = vmatpush1.msra.mxu0 0.0
        %1621 = vmatprep.subr.mxu0 0.0
        %1622 = vmatpush1.msra.mxu0 0.0
        %1623 = vmatprep.mubr.f32.mxu0 0.0
        %v1624 = vand.u32 %v1013, 4294901760
        %v1625 = vsub.f32 %v1013, %v1624
        %1626 = vmatmul.mubr.f32.gmra.mrb[0].mxu0 %v1625
        %v1627 = vpop.f32.mrb[0].mxu0
        %v1628 = vadd.f32 %v1434, %v1627
        %v1629 = vpop.f32.mrb[0].mxu0
        %1630 = vmatprep.mubr.f32.mxu0 0.0
        %v1631 = vand.u32 %v1014, 4294901760
        %v1632 = vsub.f32 %v1014, %v1631
        %1633 = vmatmul.mubr.f32.gmra.mrb[0].mxu0 %v1632
        %v1634 = vpop.f32.mrb[0].mxu0
        %v1635 = vadd.f32 %v1440, %v1634
        %v1636 = vpop.f32.mrb[0].mxu0
        %1637 = vmatprep.mubr.f32.mxu0 0.0
        %v1638 = vand.u32 %v1015, 4294901760
        %v1639 = vsub.f32 %v1015, %v1638
        %1640 = vmatmul.mubr.f32.gmra.mrb[0].mxu0 %v1639
        %v1641 = vpop.f32.mrb[0].mxu0
        %v1642 = vadd.f32 %v1446, %v1641
        %v1643 = vpop.f32.mrb[0].mxu0
        %1644 = vmatprep.mubr.f32.mxu0 0.0
        %v1645 = vand.u32 %v1016, 4294901760
        %v1646 = vsub.f32 %v1016, %v1645
        %1647 = vmatmul.mubr.f32.gmra.mrb[0].mxu0 %v1646
        %v1648 = vpop.f32.mrb[0].mxu0
        %v1649 = vadd.f32 %v1452, %v1648
        %v1650 = vpop.f32.mrb[0].mxu0
        %1651 = vmatprep.mubr.f32.mxu0 0.0
        %v1652 = vand.u32 %v1017, 4294901760
        %v1653 = vsub.f32 %v1017, %v1652
        %1654 = vmatmul.mubr.f32.gmra.mrb[0].mxu0 %v1653
        %v1655 = vpop.f32.mrb[0].mxu0
        %v1656 = vadd.f32 %v1458, %v1655
        %v1657 = vpop.f32.mrb[0].mxu0
        %1658 = vmatprep.mubr.f32.mxu0 0.0
        %v1659 = vand.u32 %v1018, 4294901760
        %v1660 = vsub.f32 %v1018, %v1659
        %1661 = vmatmul.mubr.f32.gmra.mrb[0].mxu0 %v1660
        %v1662 = vpop.f32.mrb[0].mxu0
        %v1663 = vadd.f32 %v1464, %v1662
        %v1664 = vpop.f32.mrb[0].mxu0
        %1665 = vmatprep.mubr.f32.mxu0 0.0
        %v1666 = vand.u32 %v1019, 4294901760
        %v1667 = vsub.f32 %v1019, %v1666
        %1668 = vmatmul.mubr.f32.gmra.mrb[0].mxu0 %v1667
        %v1669 = vpop.f32.mrb[0].mxu0
        %v1670 = vadd.f32 %v1470, %v1669
        %v1671 = vpop.f32.mrb[0].mxu0
        %1672 = vmatprep.mubr.f32.mxu0 0.0
        %v1673 = vand.u32 %v1020, 4294901760
        %v1674 = vsub.f32 %v1020, %v1673
        %1675 = vmatmul.mubr.f32.gmra.mrb[0].mxu0 %v1674
        %v1676 = vpop.f32.mrb[0].mxu0
        %v1677 = vadd.f32 %v1476, %v1676
        %v1678 = vpop.f32.mrb[0].mxu0
        %1679 = vmatprep.mubr.f32.mxu0 0.0
        %v1680 = vand.u32 %v1021, 4294901760
        %v1681 = vsub.f32 %v1021, %v1680
        %1682 = vmatmul.mubr.f32.gmra.mrb[0].mxu0 %v1681
        %v1683 = vpop.f32.mrb[0].mxu0
        %v1684 = vadd.f32 %v1482, %v1683
        %v1685 = vpop.f32.mrb[0].mxu0
        %1686 = vmatprep.mubr.f32.mxu0 0.0
        %v1687 = vand.u32 %v1022, 4294901760
        %v1688 = vsub.f32 %v1022, %v1687
        %1689 = vmatmul.mubr.f32.gmra.mrb[0].mxu0 %v1688
        %v1690 = vpop.f32.mrb[0].mxu0
        %v1691 = vadd.f32 %v1488, %v1690
        %v1692 = vpop.f32.mrb[0].mxu0
        %1693 = vmatprep.mubr.f32.mxu0 0.0
        %v1694 = vand.u32 %v1023, 4294901760
        %v1695 = vsub.f32 %v1023, %v1694
        %1696 = vmatmul.mubr.f32.gmra.mrb[0].mxu0 %v1695
        %v1697 = vpop.f32.mrb[0].mxu0
        %v1698 = vadd.f32 %v1494, %v1697
        %v1699 = vpop.f32.mrb[0].mxu0
        %1700 = vmatprep.mubr.f32.mxu0 0.0
        %v1701 = vand.u32 %v1024, 4294901760
        %v1702 = vsub.f32 %v1024, %v1701
        %1703 = vmatmul.mubr.f32.gmra.mrb[0].mxu0 %v1702
        %v1704 = vpop.f32.mrb[0].mxu0
        %v1705 = vadd.f32 %v1500, %v1704
        %v1706 = vpop.f32.mrb[0].mxu0
        %1707 = vmatprep.mubr.f32.mxu0 0.0
        %v1708 = vand.u32 %v1025, 4294901760
        %v1709 = vsub.f32 %v1025, %v1708
        %1710 = vmatmul.mubr.f32.gmra.mrb[0].mxu0 %v1709
        %v1711 = vpop.f32.mrb[0].mxu0
        %v1712 = vadd.f32 %v1506, %v1711
        %v1713 = vpop.f32.mrb[0].mxu0
        %1714 = vmatprep.mubr.f32.mxu0 0.0
        %v1715 = vand.u32 %v1026, 4294901760
        %v1716 = vsub.f32 %v1026, %v1715
        %1717 = vmatmul.mubr.f32.gmra.mrb[0].mxu0 %v1716
        %v1718 = vpop.f32.mrb[0].mxu0
        %v1719 = vadd.f32 %v1512, %v1718
        %v1720 = vpop.f32.mrb[0].mxu0
        %1721 = vmatprep.mubr.f32.mxu0 0.0
        %v1722 = vand.u32 %v1027, 4294901760
        %v1723 = vsub.f32 %v1027, %v1722
        %1724 = vmatmul.mubr.f32.gmra.mrb[0].mxu0 %v1723
        %v1725 = vpop.f32.mrb[0].mxu0
        %v1726 = vadd.f32 %v1518, %v1725
        %v1727 = vpop.f32.mrb[0].mxu0
        %1728 = vmatprep.mubr.f32.mxu0 0.0
        %v1729 = vand.u32 %v1028, 4294901760
        %v1730 = vsub.f32 %v1028, %v1729
        %1731 = vmatmul.mubr.f32.gmra.mrb[0].mxu0 %v1730
        %v1732 = vpop.f32.mrb[0].mxu0
        %v1733 = vadd.f32 %v1524, %v1732
        %v1734 = vpop.f32.mrb[0].mxu0
        %1735 = vdwg.mxu0
        %1736 = vmatprep.subr.mxu0 0.0
        %v1737 = vand.u32 %v1029, 4294901760
        %1738 = vmatpush1.msra.mxu0 %v1737
        %1739 = vmatprep.subr.mxu0 0.0
        %v1740 = vand.u32 %v1030, 4294901760
        %1741 = vmatpush1.msra.mxu0 %v1740
        %1742 = vmatprep.subr.mxu0 0.0
        %v1743 = vand.u32 %v1031, 4294901760
        %1744 = vmatpush1.msra.mxu0 %v1743
        %1745 = vmatprep.subr.mxu0 0.0
        %v1746 = vand.u32 %v1032, 4294901760
        %1747 = vmatpush1.msra.mxu0 %v1746
        %1748 = vmatprep.subr.mxu0 0.0
        %v1749 = vand.u32 %v1033, 4294901760
        %1750 = vmatpush1.msra.mxu0 %v1749
        %1751 = vmatprep.subr.mxu0 0.0
        %v1752 = vand.u32 %v1034, 4294901760
        %1753 = vmatpush1.msra.mxu0 %v1752
        %1754 = vmatprep.subr.mxu0 0.0
        %v1755 = vand.u32 %v1035, 4294901760
        %1756 = vmatpush1.msra.mxu0 %v1755
        %1757 = vmatprep.subr.mxu0 0.0
        %v1758 = vand.u32 %v1036, 4294901760
        %1759 = vmatpush1.msra.mxu0 %v1758
        %1760 = vmatprep.subr.mxu0 0.0
        %v1761 = vand.u32 %v1037, 4294901760
        %1762 = vmatpush1.msra.mxu0 %v1761
        %1763 = vmatprep.subr.mxu0 0.0
        %v1764 = vand.u32 %v1038, 4294901760
        %1765 = vmatpush1.msra.mxu0 %v1764
        %1766 = vmatprep.subr.mxu0 0.0
        %v1767 = vand.u32 %v1039, 4294901760
        %1768 = vmatpush1.msra.mxu0 %v1767
        %1769 = vmatprep.subr.mxu0 0.0
        %v1770 = vand.u32 %v1040, 4294901760
        %1771 = vmatpush1.msra.mxu0 %v1770
        %1772 = vmatprep.subr.mxu0 0.0
        %v1773 = vand.u32 %v1041, 4294901760
        %1774 = vmatpush1.msra.mxu0 %v1773
        %1775 = vmatprep.subr.mxu0 0.0
        %v1776 = vand.u32 %v1042, 4294901760
        %1777 = vmatpush1.msra.mxu0 %v1776
        %1778 = vmatprep.subr.mxu0 0.0
        %v1779 = vand.u32 %v1043, 4294901760
        %1780 = vmatpush1.msra.mxu0 %v1779
        %1781 = vmatprep.subr.mxu0 0.0
        %v1782 = vand.u32 %v1044, 4294901760
        %1783 = vmatpush1.msra.mxu0 %v1782
        %1784 = vmatprep.subr.mxu0 0.0
        %1785 = vmatpush1.msra.mxu0 0.0
        %1786 = vmatprep.subr.mxu0 0.0
        %1787 = vmatpush1.msra.mxu0 0.0
        %1788 = vmatprep.subr.mxu0 0.0
        %1789 = vmatpush1.msra.mxu0 0.0
        %1790 = vmatprep.subr.mxu0 0.0
        %1791 = vmatpush1.msra.mxu0 0.0
        %1792 = vmatprep.subr.mxu0 0.0
        %1793 = vmatpush1.msra.mxu0 0.0
        %1794 = vmatprep.subr.mxu0 0.0
        %1795 = vmatpush1.msra.mxu0 0.0
        %1796 = vmatprep.subr.mxu0 0.0
        %1797 = vmatpush1.msra.mxu0 0.0
        %1798 = vmatprep.subr.mxu0 0.0
        %1799 = vmatpush1.msra.mxu0 0.0
        %1800 = vmatprep.subr.mxu0 0.0
        %1801 = vmatpush1.msra.mxu0 0.0
        %1802 = vmatprep.subr.mxu0 0.0
        %1803 = vmatpush1.msra.mxu0 0.0
        %1804 = vmatprep.subr.mxu0 0.0
        %1805 = vmatpush1.msra.mxu0 0.0
        %1806 = vmatprep.subr.mxu0 0.0
        %1807 = vmatpush1.msra.mxu0 0.0
        %1808 = vmatprep.subr.mxu0 0.0
        %1809 = vmatpush1.msra.mxu0 0.0
        %1810 = vmatprep.subr.mxu0 0.0
        %1811 = vmatpush1.msra.mxu0 0.0
        %1812 = vmatprep.subr.mxu0 0.0
        %1813 = vmatpush1.msra.mxu0 0.0
        %1814 = vmatprep.subr.mxu0 0.0
        %1815 = vmatpush1.msra.mxu0 0.0
        %1816 = vmatprep.mubr.f32.mxu0 0.0
        %v1817 = vand.u32 %v1013, 4294901760
        %v1818 = vsub.f32 %v1013, %v1817
        %v1819 = vand.u32 %v1818, 4294901760
        %1820 = vmatmul.mubr.f32.gmra.mrb[0].mxu0 %v1819
        %v1821 = vpop.f32.mrb[0].mxu0
        %v1822 = vadd.f32 %v1628, %v1821
        %v1823 = vpop.f32.mrb[0].mxu0
        %1824 = vmatprep.mubr.f32.mxu0 0.0
        %v1825 = vand.u32 %v1014, 4294901760
        %v1826 = vsub.f32 %v1014, %v1825
        %v1827 = vand.u32 %v1826, 4294901760
        %1828 = vmatmul.mubr.f32.gmra.mrb[0].mxu0 %v1827
        %v1829 = vpop.f32.mrb[0].mxu0
        %v1830 = vadd.f32 %v1635, %v1829
        %v1831 = vpop.f32.mrb[0].mxu0
        %1832 = vmatprep.mubr.f32.mxu0 0.0
        %v1833 = vand.u32 %v1015, 4294901760
        %v1834 = vsub.f32 %v1015, %v1833
        %v1835 = vand.u32 %v1834, 4294901760
        %1836 = vmatmul.mubr.f32.gmra.mrb[0].mxu0 %v1835
        %v1837 = vpop.f32.mrb[0].mxu0
        %v1838 = vadd.f32 %v1642, %v1837
        %v1839 = vpop.f32.mrb[0].mxu0
        %1840 = vmatprep.mubr.f32.mxu0 0.0
        %v1841 = vand.u32 %v1016, 4294901760
        %v1842 = vsub.f32 %v1016, %v1841
        %v1843 = vand.u32 %v1842, 4294901760
        %1844 = vmatmul.mubr.f32.gmra.mrb[0].mxu0 %v1843
        %v1845 = vpop.f32.mrb[0].mxu0
        %v1846 = vadd.f32 %v1649, %v1845
        %v1847 = vpop.f32.mrb[0].mxu0
        %1848 = vmatprep.mubr.f32.mxu0 0.0
        %v1849 = vand.u32 %v1017, 4294901760
        %v1850 = vsub.f32 %v1017, %v1849
        %v1851 = vand.u32 %v1850, 4294901760
        %1852 = vmatmul.mubr.f32.gmra.mrb[0].mxu0 %v1851
        %v1853 = vpop.f32.mrb[0].mxu0
        %v1854 = vadd.f32 %v1656, %v1853
        %v1855 = vpop.f32.mrb[0].mxu0
        %1856 = vmatprep.mubr.f32.mxu0 0.0
        %v1857 = vand.u32 %v1018, 4294901760
        %v1858 = vsub.f32 %v1018, %v1857
        %v1859 = vand.u32 %v1858, 4294901760
        %1860 = vmatmul.mubr.f32.gmra.mrb[0].mxu0 %v1859
        %v1861 = vpop.f32.mrb[0].mxu0
        %v1862 = vadd.f32 %v1663, %v1861
        %v1863 = vpop.f32.mrb[0].mxu0
        %1864 = vmatprep.mubr.f32.mxu0 0.0
        %v1865 = vand.u32 %v1019, 4294901760
        %v1866 = vsub.f32 %v1019, %v1865
        %v1867 = vand.u32 %v1866, 4294901760
        %1868 = vmatmul.mubr.f32.gmra.mrb[0].mxu0 %v1867
        %v1869 = vpop.f32.mrb[0].mxu0
        %v1870 = vadd.f32 %v1670, %v1869
        %v1871 = vpop.f32.mrb[0].mxu0
        %1872 = vmatprep.mubr.f32.mxu0 0.0
        %v1873 = vand.u32 %v1020, 4294901760
        %v1874 = vsub.f32 %v1020, %v1873
        %v1875 = vand.u32 %v1874, 4294901760
        %1876 = vmatmul.mubr.f32.gmra.mrb[0].mxu0 %v1875
        %v1877 = vpop.f32.mrb[0].mxu0
        %v1878 = vadd.f32 %v1677, %v1877
        %v1879 = vpop.f32.mrb[0].mxu0
        %1880 = vmatprep.mubr.f32.mxu0 0.0
        %v1881 = vand.u32 %v1021, 4294901760
        %v1882 = vsub.f32 %v1021, %v1881
        %v1883 = vand.u32 %v1882, 4294901760
        %1884 = vmatmul.mubr.f32.gmra.mrb[0].mxu0 %v1883
        %v1885 = vpop.f32.mrb[0].mxu0
        %v1886 = vadd.f32 %v1684, %v1885
        %v1887 = vpop.f32.mrb[0].mxu0
        %1888 = vmatprep.mubr.f32.mxu0 0.0
        %v1889 = vand.u32 %v1022, 4294901760
        %v1890 = vsub.f32 %v1022, %v1889
        %v1891 = vand.u32 %v1890, 4294901760
        %1892 = vmatmul.mubr.f32.gmra.mrb[0].mxu0 %v1891
        %v1893 = vpop.f32.mrb[0].mxu0
        %v1894 = vadd.f32 %v1691, %v1893
        %v1895 = vpop.f32.mrb[0].mxu0
        %1896 = vmatprep.mubr.f32.mxu0 0.0
        %v1897 = vand.u32 %v1023, 4294901760
        %v1898 = vsub.f32 %v1023, %v1897
        %v1899 = vand.u32 %v1898, 4294901760
        %1900 = vmatmul.mubr.f32.gmra.mrb[0].mxu0 %v1899
        %v1901 = vpop.f32.mrb[0].mxu0
        %v1902 = vadd.f32 %v1698, %v1901
        %v1903 = vpop.f32.mrb[0].mxu0
        %1904 = vmatprep.mubr.f32.mxu0 0.0
        %v1905 = vand.u32 %v1024, 4294901760
        %v1906 = vsub.f32 %v1024, %v1905
        %v1907 = vand.u32 %v1906, 4294901760
        %1908 = vmatmul.mubr.f32.gmra.mrb[0].mxu0 %v1907
        %v1909 = vpop.f32.mrb[0].mxu0
        %v1910 = vadd.f32 %v1705, %v1909
        %v1911 = vpop.f32.mrb[0].mxu0
        %1912 = vmatprep.mubr.f32.mxu0 0.0
        %v1913 = vand.u32 %v1025, 4294901760
        %v1914 = vsub.f32 %v1025, %v1913
        %v1915 = vand.u32 %v1914, 4294901760
        %1916 = vmatmul.mubr.f32.gmra.mrb[0].mxu0 %v1915
        %v1917 = vpop.f32.mrb[0].mxu0
        %v1918 = vadd.f32 %v1712, %v1917
        %v1919 = vpop.f32.mrb[0].mxu0
        %1920 = vmatprep.mubr.f32.mxu0 0.0
        %v1921 = vand.u32 %v1026, 4294901760
        %v1922 = vsub.f32 %v1026, %v1921
        %v1923 = vand.u32 %v1922, 4294901760
        %1924 = vmatmul.mubr.f32.gmra.mrb[0].mxu0 %v1923
        %v1925 = vpop.f32.mrb[0].mxu0
        %v1926 = vadd.f32 %v1719, %v1925
        %v1927 = vpop.f32.mrb[0].mxu0
        %1928 = vmatprep.mubr.f32.mxu0 0.0
        %v1929 = vand.u32 %v1027, 4294901760
        %v1930 = vsub.f32 %v1027, %v1929
        %v1931 = vand.u32 %v1930, 4294901760
        %1932 = vmatmul.mubr.f32.gmra.mrb[0].mxu0 %v1931
        %v1933 = vpop.f32.mrb[0].mxu0
        %v1934 = vadd.f32 %v1726, %v1933
        %v1935 = vpop.f32.mrb[0].mxu0
        %1936 = vmatprep.mubr.f32.mxu0 0.0
        %v1937 = vand.u32 %v1028, 4294901760
        %v1938 = vsub.f32 %v1028, %v1937
        %v1939 = vand.u32 %v1938, 4294901760
        %1940 = vmatmul.mubr.f32.gmra.mrb[0].mxu0 %v1939
        %v1941 = vpop.f32.mrb[0].mxu0
        %v1942 = vadd.f32 %v1733, %v1941
        %v1943 = vpop.f32.mrb[0].mxu0
        %1944 = vdwg.mxu0
        %1945 = vmatprep.subr.mxu0 0.0
        %v1946 = vand.u32 %v1029, 4294901760
        %v1947 = vsub.f32 %v1029, %v1946
        %v1948 = vand.u32 %v1947, 4294901760
        %1949 = vmatpush1.msra.mxu0 %v1948
        %1950 = vmatprep.subr.mxu0 0.0
        %v1951 = vand.u32 %v1030, 4294901760
        %v1952 = vsub.f32 %v1030, %v1951
        %v1953 = vand.u32 %v1952, 4294901760
        %1954 = vmatpush1.msra.mxu0 %v1953
        %1955 = vmatprep.subr.mxu0 0.0
        %v1956 = vand.u32 %v1031, 4294901760
        %v1957 = vsub.f32 %v1031, %v1956
        %v1958 = vand.u32 %v1957, 4294901760
        %1959 = vmatpush1.msra.mxu0 %v1958
        %1960 = vmatprep.subr.mxu0 0.0
        %v1961 = vand.u32 %v1032, 4294901760
        %v1962 = vsub.f32 %v1032, %v1961
        %v1963 = vand.u32 %v1962, 4294901760
        %1964 = vmatpush1.msra.mxu0 %v1963
        %1965 = vmatprep.subr.mxu0 0.0
        %v1966 = vand.u32 %v1033, 4294901760
        %v1967 = vsub.f32 %v1033, %v1966
        %v1968 = vand.u32 %v1967, 4294901760
        %1969 = vmatpush1.msra.mxu0 %v1968
        %1970 = vmatprep.subr.mxu0 0.0
        %v1971 = vand.u32 %v1034, 4294901760
        %v1972 = vsub.f32 %v1034, %v1971
        %v1973 = vand.u32 %v1972, 4294901760
        %1974 = vmatpush1.msra.mxu0 %v1973
        %1975 = vmatprep.subr.mxu0 0.0
        %v1976 = vand.u32 %v1035, 4294901760
        %v1977 = vsub.f32 %v1035, %v1976
        %v1978 = vand.u32 %v1977, 4294901760
        %1979 = vmatpush1.msra.mxu0 %v1978
        %1980 = vmatprep.subr.mxu0 0.0
        %v1981 = vand.u32 %v1036, 4294901760
        %v1982 = vsub.f32 %v1036, %v1981
        %v1983 = vand.u32 %v1982, 4294901760
        %1984 = vmatpush1.msra.mxu0 %v1983
        %1985 = vmatprep.subr.mxu0 0.0
        %v1986 = vand.u32 %v1037, 4294901760
        %v1987 = vsub.f32 %v1037, %v1986
        %v1988 = vand.u32 %v1987, 4294901760
        %1989 = vmatpush1.msra.mxu0 %v1988
        %1990 = vmatprep.subr.mxu0 0.0
        %v1991 = vand.u32 %v1038, 4294901760
        %v1992 = vsub.f32 %v1038, %v1991
        %v1993 = vand.u32 %v1992, 4294901760
        %1994 = vmatpush1.msra.mxu0 %v1993
        %1995 = vmatprep.subr.mxu0 0.0
        %v1996 = vand.u32 %v1039, 4294901760
        %v1997 = vsub.f32 %v1039, %v1996
        %v1998 = vand.u32 %v1997, 4294901760
        %1999 = vmatpush1.msra.mxu0 %v1998
        %2000 = vmatprep.subr.mxu0 0.0
        %v2001 = vand.u32 %v1040, 4294901760
        %v2002 = vsub.f32 %v1040, %v2001
        %v2003 = vand.u32 %v2002, 4294901760
        %2004 = vmatpush1.msra.mxu0 %v2003
        %2005 = vmatprep.subr.mxu0 0.0
        %v2006 = vand.u32 %v1041, 4294901760
        %v2007 = vsub.f32 %v1041, %v2006
        %v2008 = vand.u32 %v2007, 4294901760
        %2009 = vmatpush1.msra.mxu0 %v2008
        %2010 = vmatprep.subr.mxu0 0.0
        %v2011 = vand.u32 %v1042, 4294901760
        %v2012 = vsub.f32 %v1042, %v2011
        %v2013 = vand.u32 %v2012, 4294901760
        %2014 = vmatpush1.msra.mxu0 %v2013
        %2015 = vmatprep.subr.mxu0 0.0
        %v2016 = vand.u32 %v1043, 4294901760
        %v2017 = vsub.f32 %v1043, %v2016
        %v2018 = vand.u32 %v2017, 4294901760
        %2019 = vmatpush1.msra.mxu0 %v2018
        %2020 = vmatprep.subr.mxu0 0.0
        %v2021 = vand.u32 %v1044, 4294901760
        %v2022 = vsub.f32 %v1044, %v2021
        %v2023 = vand.u32 %v2022, 4294901760
        %2024 = vmatpush1.msra.mxu0 %v2023
        %2025 = vmatprep.subr.mxu0 0.0
        %2026 = vmatpush1.msra.mxu0 0.0
        %2027 = vmatprep.subr.mxu0 0.0
        %2028 = vmatpush1.msra.mxu0 0.0
        %2029 = vmatprep.subr.mxu0 0.0
        %2030 = vmatpush1.msra.mxu0 0.0
        %2031 = vmatprep.subr.mxu0 0.0
        %2032 = vmatpush1.msra.mxu0 0.0
        %2033 = vmatprep.subr.mxu0 0.0
        %2034 = vmatpush1.msra.mxu0 0.0
        %2035 = vmatprep.subr.mxu0 0.0
        %2036 = vmatpush1.msra.mxu0 0.0
        %2037 = vmatprep.subr.mxu0 0.0
        %2038 = vmatpush1.msra.mxu0 0.0
        %2039 = vmatprep.subr.mxu0 0.0
        %2040 = vmatpush1.msra.mxu0 0.0
        %2041 = vmatprep.subr.mxu0 0.0
        %2042 = vmatpush1.msra.mxu0 0.0
        %2043 = vmatprep.subr.mxu0 0.0
        %2044 = vmatpush1.msra.mxu0 0.0
        %2045 = vmatprep.subr.mxu0 0.0
        %2046 = vmatpush1.msra.mxu0 0.0
        %2047 = vmatprep.subr.mxu0 0.0
        %2048 = vmatpush1.msra.mxu0 0.0
        %2049 = vmatprep.subr.mxu0 0.0
        %2050 = vmatpush1.msra.mxu0 0.0
        %2051 = vmatprep.subr.mxu0 0.0
        %2052 = vmatpush1.msra.mxu0 0.0
        %2053 = vmatprep.subr.mxu0 0.0
        %2054 = vmatpush1.msra.mxu0 0.0
        %2055 = vmatprep.subr.mxu0 0.0
        %2056 = vmatpush1.msra.mxu0 0.0
        %2057 = vmatprep.mubr.f32.mxu0 0.0
        %v2058 = vand.u32 %v1013, 4294901760
        %2059 = vmatmul.mubr.f32.gmra.mrb[0].mxu0 %v2058
        %v2060 = vpop.f32.mrb[0].mxu0
        %v2061 = vadd.f32 %v1822, %v2060
        %v2062 = vpop.f32.mrb[0].mxu0
        %2063 = vmatprep.mubr.f32.mxu0 0.0
        %v2064 = vand.u32 %v1014, 4294901760
        %2065 = vmatmul.mubr.f32.gmra.mrb[0].mxu0 %v2064
        %v2066 = vpop.f32.mrb[0].mxu0
        %v2067 = vadd.f32 %v1830, %v2066
        %v2068 = vpop.f32.mrb[0].mxu0
        %2069 = vmatprep.mubr.f32.mxu0 0.0
        %v2070 = vand.u32 %v1015, 4294901760
        %2071 = vmatmul.mubr.f32.gmra.mrb[0].mxu0 %v2070
        %v2072 = vpop.f32.mrb[0].mxu0
        %v2073 = vadd.f32 %v1838, %v2072
        %v2074 = vpop.f32.mrb[0].mxu0
        %2075 = vmatprep.mubr.f32.mxu0 0.0
        %v2076 = vand.u32 %v1016, 4294901760
        %2077 = vmatmul.mubr.f32.gmra.mrb[0].mxu0 %v2076
        %v2078 = vpop.f32.mrb[0].mxu0
        %v2079 = vadd.f32 %v1846, %v2078
        %v2080 = vpop.f32.mrb[0].mxu0
        %2081 = vmatprep.mubr.f32.mxu0 0.0
        %v2082 = vand.u32 %v1017, 4294901760
        %2083 = vmatmul.mubr.f32.gmra.mrb[0].mxu0 %v2082
        %v2084 = vpop.f32.mrb[0].mxu0
        %v2085 = vadd.f32 %v1854, %v2084
        %v2086 = vpop.f32.mrb[0].mxu0
        %2087 = vmatprep.mubr.f32.mxu0 0.0
        %v2088 = vand.u32 %v1018, 4294901760
        %2089 = vmatmul.mubr.f32.gmra.mrb[0].mxu0 %v2088
        %v2090 = vpop.f32.mrb[0].mxu0
        %v2091 = vadd.f32 %v1862, %v2090
        %v2092 = vpop.f32.mrb[0].mxu0
        %2093 = vmatprep.mubr.f32.mxu0 0.0
        %v2094 = vand.u32 %v1019, 4294901760
        %2095 = vmatmul.mubr.f32.gmra.mrb[0].mxu0 %v2094
        %v2096 = vpop.f32.mrb[0].mxu0
        %v2097 = vadd.f32 %v1870, %v2096
        %v2098 = vpop.f32.mrb[0].mxu0
        %2099 = vmatprep.mubr.f32.mxu0 0.0
        %v2100 = vand.u32 %v1020, 4294901760
        %2101 = vmatmul.mubr.f32.gmra.mrb[0].mxu0 %v2100
        %v2102 = vpop.f32.mrb[0].mxu0
        %v2103 = vadd.f32 %v1878, %v2102
        %v2104 = vpop.f32.mrb[0].mxu0
        %2105 = vmatprep.mubr.f32.mxu0 0.0
        %v2106 = vand.u32 %v1021, 4294901760
        %2107 = vmatmul.mubr.f32.gmra.mrb[0].mxu0 %v2106
        %v2108 = vpop.f32.mrb[0].mxu0
        %v2109 = vadd.f32 %v1886, %v2108
        %v2110 = vpop.f32.mrb[0].mxu0
        %2111 = vmatprep.mubr.f32.mxu0 0.0
        %v2112 = vand.u32 %v1022, 4294901760
        %2113 = vmatmul.mubr.f32.gmra.mrb[0].mxu0 %v2112
        %v2114 = vpop.f32.mrb[0].mxu0
        %v2115 = vadd.f32 %v1894, %v2114
        %v2116 = vpop.f32.mrb[0].mxu0
        %2117 = vmatprep.mubr.f32.mxu0 0.0
        %v2118 = vand.u32 %v1023, 4294901760
        %2119 = vmatmul.mubr.f32.gmra.mrb[0].mxu0 %v2118
        %v2120 = vpop.f32.mrb[0].mxu0
        %v2121 = vadd.f32 %v1902, %v2120
        %v2122 = vpop.f32.mrb[0].mxu0
        %2123 = vmatprep.mubr.f32.mxu0 0.0
        %v2124 = vand.u32 %v1024, 4294901760
        %2125 = vmatmul.mubr.f32.gmra.mrb[0].mxu0 %v2124
        %v2126 = vpop.f32.mrb[0].mxu0
        %v2127 = vadd.f32 %v1910, %v2126
        %v2128 = vpop.f32.mrb[0].mxu0
        %2129 = vmatprep.mubr.f32.mxu0 0.0
        %v2130 = vand.u32 %v1025, 4294901760
        %2131 = vmatmul.mubr.f32.gmra.mrb[0].mxu0 %v2130
        %v2132 = vpop.f32.mrb[0].mxu0
        %v2133 = vadd.f32 %v1918, %v2132
        %v2134 = vpop.f32.mrb[0].mxu0
        %2135 = vmatprep.mubr.f32.mxu0 0.0
        %v2136 = vand.u32 %v1026, 4294901760
        %2137 = vmatmul.mubr.f32.gmra.mrb[0].mxu0 %v2136
        %v2138 = vpop.f32.mrb[0].mxu0
        %v2139 = vadd.f32 %v1926, %v2138
        %v2140 = vpop.f32.mrb[0].mxu0
        %2141 = vmatprep.mubr.f32.mxu0 0.0
        %v2142 = vand.u32 %v1027, 4294901760
        %2143 = vmatmul.mubr.f32.gmra.mrb[0].mxu0 %v2142
        %v2144 = vpop.f32.mrb[0].mxu0
        %v2145 = vadd.f32 %v1934, %v2144
        %v2146 = vpop.f32.mrb[0].mxu0
        %2147 = vmatprep.mubr.f32.mxu0 0.0
        %v2148 = vand.u32 %v1028, 4294901760
        %2149 = vmatmul.mubr.f32.gmra.mrb[0].mxu0 %v2148
        %v2150 = vpop.f32.mrb[0].mxu0
        %v2151 = vadd.f32 %v1942, %v2150
        %v2152 = vpop.f32.mrb[0].mxu0
        %2153 = vdwg.mxu0
        %2154 = vmatprep.subr.mxu0 0.0
        %v2155 = vand.u32 %v1029, 4294901760
        %2156 = vmatpush1.msra.mxu0 %v2155
        %2157 = vmatprep.subr.mxu0 0.0
        %v2158 = vand.u32 %v1030, 4294901760
        %2159 = vmatpush1.msra.mxu0 %v2158
        %2160 = vmatprep.subr.mxu0 0.0
        %v2161 = vand.u32 %v1031, 4294901760
        %2162 = vmatpush1.msra.mxu0 %v2161
        %2163 = vmatprep.subr.mxu0 0.0
        %v2164 = vand.u32 %v1032, 4294901760
        %2165 = vmatpush1.msra.mxu0 %v2164
        %2166 = vmatprep.subr.mxu0 0.0
        %v2167 = vand.u32 %v1033, 4294901760
        %2168 = vmatpush1.msra.mxu0 %v2167
        %2169 = vmatprep.subr.mxu0 0.0
        %v2170 = vand.u32 %v1034, 4294901760
        %2171 = vmatpush1.msra.mxu0 %v2170
        %2172 = vmatprep.subr.mxu0 0.0
        %v2173 = vand.u32 %v1035, 4294901760
        %2174 = vmatpush1.msra.mxu0 %v2173
        %2175 = vmatprep.subr.mxu0 0.0
        %v2176 = vand.u32 %v1036, 4294901760
        %2177 = vmatpush1.msra.mxu0 %v2176
        %2178 = vmatprep.subr.mxu0 0.0
        %v2179 = vand.u32 %v1037, 4294901760
        %2180 = vmatpush1.msra.mxu0 %v2179
        %2181 = vmatprep.subr.mxu0 0.0
        %v2182 = vand.u32 %v1038, 4294901760
        %2183 = vmatpush1.msra.mxu0 %v2182
        %2184 = vmatprep.subr.mxu0 0.0
        %v2185 = vand.u32 %v1039, 4294901760
        %2186 = vmatpush1.msra.mxu0 %v2185
        %2187 = vmatprep.subr.mxu0 0.0
        %v2188 = vand.u32 %v1040, 4294901760
        %2189 = vmatpush1.msra.mxu0 %v2188
        %2190 = vmatprep.subr.mxu0 0.0
        %v2191 = vand.u32 %v1041, 4294901760
        %2192 = vmatpush1.msra.mxu0 %v2191
        %2193 = vmatprep.subr.mxu0 0.0
        %v2194 = vand.u32 %v1042, 4294901760
        %2195 = vmatpush1.msra.mxu0 %v2194
        %2196 = vmatprep.subr.mxu0 0.0
        %v2197 = vand.u32 %v1043, 4294901760
        %2198 = vmatpush1.msra.mxu0 %v2197
        %2199 = vmatprep.subr.mxu0 0.0
        %v2200 = vand.u32 %v1044, 4294901760
        %2201 = vmatpush1.msra.mxu0 %v2200
        %2202 = vmatprep.subr.mxu0 0.0
        %2203 = vmatpush1.msra.mxu0 0.0
        %2204 = vmatprep.subr.mxu0 0.0
        %2205 = vmatpush1.msra.mxu0 0.0
        %2206 = vmatprep.subr.mxu0 0.0
        %2207 = vmatpush1.msra.mxu0 0.0
        %2208 = vmatprep.subr.mxu0 0.0
        %2209 = vmatpush1.msra.mxu0 0.0
        %2210 = vmatprep.subr.mxu0 0.0
        %2211 = vmatpush1.msra.mxu0 0.0
        %2212 = vmatprep.subr.mxu0 0.0
        %2213 = vmatpush1.msra.mxu0 0.0
        %2214 = vmatprep.subr.mxu0 0.0
        %2215 = vmatpush1.msra.mxu0 0.0
        %2216 = vmatprep.subr.mxu0 0.0
        %2217 = vmatpush1.msra.mxu0 0.0
        %2218 = vmatprep.subr.mxu0 0.0
        %2219 = vmatpush1.msra.mxu0 0.0
        %2220 = vmatprep.subr.mxu0 0.0
        %2221 = vmatpush1.msra.mxu0 0.0
        %2222 = vmatprep.subr.mxu0 0.0
        %2223 = vmatpush1.msra.mxu0 0.0
        %2224 = vmatprep.subr.mxu0 0.0
        %2225 = vmatpush1.msra.mxu0 0.0
        %2226 = vmatprep.subr.mxu0 0.0
        %2227 = vmatpush1.msra.mxu0 0.0
        %2228 = vmatprep.subr.mxu0 0.0
        %2229 = vmatpush1.msra.mxu0 0.0
        %2230 = vmatprep.subr.mxu0 0.0
        %2231 = vmatpush1.msra.mxu0 0.0
        %2232 = vmatprep.subr.mxu0 0.0
        %2233 = vmatpush1.msra.mxu0 0.0
        %2234 = vmatprep.mubr.f32.mxu0 0.0
        %v2235 = vand.u32 %v1013, 4294901760
        %2236 = vmatmul.mubr.f32.gmra.mrb[0].mxu0 %v2235
        %v2237 = vpop.f32.mrb[0].mxu0
        %v2238 = vadd.f32 %v2061, %v2237
        %v2239 = vpop.f32.mrb[0].mxu0
        %2240 = vmatprep.mubr.f32.mxu0 0.0
        %v2241 = vand.u32 %v1014, 4294901760
        %2242 = vmatmul.mubr.f32.gmra.mrb[0].mxu0 %v2241
        %v2243 = vpop.f32.mrb[0].mxu0
        %v2244 = vadd.f32 %v2067, %v2243
        %v2245 = vpop.f32.mrb[0].mxu0
        %2246 = vmatprep.mubr.f32.mxu0 0.0
        %v2247 = vand.u32 %v1015, 4294901760
        %2248 = vmatmul.mubr.f32.gmra.mrb[0].mxu0 %v2247
        %v2249 = vpop.f32.mrb[0].mxu0
        %v2250 = vadd.f32 %v2073, %v2249
        %v2251 = vpop.f32.mrb[0].mxu0
        %2252 = vmatprep.mubr.f32.mxu0 0.0
        %v2253 = vand.u32 %v1016, 4294901760
        %2254 = vmatmul.mubr.f32.gmra.mrb[0].mxu0 %v2253
        %v2255 = vpop.f32.mrb[0].mxu0
        %v2256 = vadd.f32 %v2079, %v2255
        %v2257 = vpop.f32.mrb[0].mxu0
        %2258 = vmatprep.mubr.f32.mxu0 0.0
        %v2259 = vand.u32 %v1017, 4294901760
        %2260 = vmatmul.mubr.f32.gmra.mrb[0].mxu0 %v2259
        %v2261 = vpop.f32.mrb[0].mxu0
        %v2262 = vadd.f32 %v2085, %v2261
        %v2263 = vpop.f32.mrb[0].mxu0
        %2264 = vmatprep.mubr.f32.mxu0 0.0
        %v2265 = vand.u32 %v1018, 4294901760
        %2266 = vmatmul.mubr.f32.gmra.mrb[0].mxu0 %v2265
        %v2267 = vpop.f32.mrb[0].mxu0
        %v2268 = vadd.f32 %v2091, %v2267
        %v2269 = vpop.f32.mrb[0].mxu0
        %2270 = vmatprep.mubr.f32.mxu0 0.0
        %v2271 = vand.u32 %v1019, 4294901760
        %2272 = vmatmul.mubr.f32.gmra.mrb[0].mxu0 %v2271
        %v2273 = vpop.f32.mrb[0].mxu0
        %v2274 = vadd.f32 %v2097, %v2273
        %v2275 = vpop.f32.mrb[0].mxu0
        %2276 = vmatprep.mubr.f32.mxu0 0.0
        %v2277 = vand.u32 %v1020, 4294901760
        %2278 = vmatmul.mubr.f32.gmra.mrb[0].mxu0 %v2277
        %v2279 = vpop.f32.mrb[0].mxu0
        %v2280 = vadd.f32 %v2103, %v2279
        %v2281 = vpop.f32.mrb[0].mxu0
        %2282 = vmatprep.mubr.f32.mxu0 0.0
        %v2283 = vand.u32 %v1021, 4294901760
        %2284 = vmatmul.mubr.f32.gmra.mrb[0].mxu0 %v2283
        %v2285 = vpop.f32.mrb[0].mxu0
        %v2286 = vadd.f32 %v2109, %v2285
        %v2287 = vpop.f32.mrb[0].mxu0
        %2288 = vmatprep.mubr.f32.mxu0 0.0
        %v2289 = vand.u32 %v1022, 4294901760
        %2290 = vmatmul.mubr.f32.gmra.mrb[0].mxu0 %v2289
        %v2291 = vpop.f32.mrb[0].mxu0
        %v2292 = vadd.f32 %v2115, %v2291
        %v2293 = vpop.f32.mrb[0].mxu0
        %2294 = vmatprep.mubr.f32.mxu0 0.0
        %v2295 = vand.u32 %v1023, 4294901760
        %2296 = vmatmul.mubr.f32.gmra.mrb[0].mxu0 %v2295
        %v2297 = vpop.f32.mrb[0].mxu0
        %v2298 = vadd.f32 %v2121, %v2297
        %v2299 = vpop.f32.mrb[0].mxu0
        %2300 = vmatprep.mubr.f32.mxu0 0.0
        %v2301 = vand.u32 %v1024, 4294901760
        %2302 = vmatmul.mubr.f32.gmra.mrb[0].mxu0 %v2301
        %v2303 = vpop.f32.mrb[0].mxu0
        %v2304 = vadd.f32 %v2127, %v2303
        %v2305 = vpop.f32.mrb[0].mxu0
        %2306 = vmatprep.mubr.f32.mxu0 0.0
        %v2307 = vand.u32 %v1025, 4294901760
        %2308 = vmatmul.mubr.f32.gmra.mrb[0].mxu0 %v2307
        %v2309 = vpop.f32.mrb[0].mxu0
        %v2310 = vadd.f32 %v2133, %v2309
        %v2311 = vpop.f32.mrb[0].mxu0
        %2312 = vmatprep.mubr.f32.mxu0 0.0
        %v2313 = vand.u32 %v1026, 4294901760
        %2314 = vmatmul.mubr.f32.gmra.mrb[0].mxu0 %v2313
        %v2315 = vpop.f32.mrb[0].mxu0
        %v2316 = vadd.f32 %v2139, %v2315
        %v2317 = vpop.f32.mrb[0].mxu0
        %2318 = vmatprep.mubr.f32.mxu0 0.0
        %v2319 = vand.u32 %v1027, 4294901760
        %2320 = vmatmul.mubr.f32.gmra.mrb[0].mxu0 %v2319
        %v2321 = vpop.f32.mrb[0].mxu0
        %v2322 = vadd.f32 %v2145, %v2321
        %v2323 = vpop.f32.mrb[0].mxu0
        %2324 = vmatprep.mubr.f32.mxu0 0.0
        %v2325 = vand.u32 %v1028, 4294901760
        %2326 = vmatmul.mubr.f32.gmra.mrb[0].mxu0 %v2325
        %v2327 = vpop.f32.mrb[0].mxu0
        %v2328 = vadd.f32 %v2151, %v2327
        %v2329 = vpop.f32.mrb[0].mxu0
        %2330 = vdwg.mxu0
        %2331 = vst [vmem:[%s164] sm:$0xff] %v2238
        %2332 = vst [vmem:[%s164 + $0x8] sm:$0xff] %v2244
        %2333 = vst [vmem:[%s164 + $0x10] sm:$0xff] %v2250
        %2334 = vst [vmem:[%s164 + $0x18] sm:$0xff] %v2256
        %2335 = vst [vmem:[%s164 + $0x20] sm:$0xff] %v2262
        %2336 = vst [vmem:[%s164 + $0x28] sm:$0xff] %v2268
        %2337 = vst [vmem:[%s164 + $0x30] sm:$0xff] %v2274
        %2338 = vst [vmem:[%s164 + $0x38] sm:$0xff] %v2280
        %2339 = vst [vmem:[%s164 + $0x40] sm:$0xff] %v2286
        %2340 = vst [vmem:[%s164 + $0x48] sm:$0xff] %v2292
        %2341 = vst [vmem:[%s164 + $0x50] sm:$0xff] %v2298
        %2342 = vst [vmem:[%s164 + $0x58] sm:$0xff] %v2304
        %2343 = vst [vmem:[%s164 + $0x60] sm:$0xff] %v2310
        %2344 = vst [vmem:[%s164 + $0x68] sm:$0xff] %v2316
        %2345 = vst [vmem:[%s164 + $0x70] sm:$0xff] %v2322
        %2346 = vst [vmem:[%s164 + $0x78] sm:$0xff] %v2328
        %s2347 = sand.u32 %s93, 1
        %s2348 = scalar_lea.sflag [#allocation3], %s2347
        %s2349 = sand.u32 %s93, 1
        %s2350 = smul.addr %s2349, 128
        %s2351 = scalar_lea.vmem [#allocation2], %s2350
        // Predicated region
        $region33: #{tpu_custom_call.1} parent=31 // pred_check
          %p2352 = pneg %p103
        $region34: #{tpu_custom_call.1} parent=31 // pred_check_branch
          %2354 = sbr.rel (%p2352) target = $region36
        $region35: #{tpu_custom_call.1} parent=31 // pred_region
          %s2355 = smul.u32 16, %s17
          %s2357 = ssub.s32 2048, 2048
          %2358 = vsyncadd %s2348, %s2357
          %s2359 = smul.addr %s2355, 128
          %s2360 = scalar_lea.hbm %s3, %s2359
          %s2361 = sshll.u32 %s2351, 4
          %s2362 = int_to_ptr.vmem [resolvable:$true] %s2361
          %2367 = dma.vmem_to_hbm [thread:$0]  %s2362, 2048, %s2360, %s2348, 128, 128, 8
        $region36: #{tpu_custom_call.1} parent=31 // pred_fallthru
          _
      $region32: #{tpu_custom_call.1} parent=5 // pred_fallthru
        _
      %p2368 = scmp.le.s32.totalorder 2, %s12
      // Predicated region
      $region37: #{tpu_custom_call.1} parent=5 // pred_check
        %p2369 = pneg %p2368
      $region38: #{tpu_custom_call.1} parent=5 // pred_check_branch
        %2371 = sbr.rel (%p2369) target = $region40
      $region39: #{tpu_custom_call.1} parent=5 // pred_region
        %s2372 = ssub.s32 %s12, 2
        // Predicated region
        $region41: #{tpu_custom_call.1} parent=39 // pred_check
          %p2373 = pneg %p109
        $region42: #{tpu_custom_call.1} parent=39 // pred_check_branch
          %2375 = sbr.rel (%p2373) target = $region44
        $region43: #{tpu_custom_call.1} parent=39 // pred_region
          %s2376 = sand.u32 %s94, 1
          %s2377 = scalar_lea.sflag [#allocation3], %s2376
          %s2378 = sand.u32 %s94, 1
          %s2379 = smul.addr %s2378, 128
          %s2380 = scalar_lea.vmem [#allocation2], %s2379
          %2381 = dma.done %s2377, 2048
        $region44: #{tpu_custom_call.1} parent=39 // pred_fallthru
          _
      $region40: #{tpu_custom_call.1} parent=5 // pred_fallthru
        _
    $region6: #{tpu_custom_call.1} parent=1 // loop_footer
      %s16 = sadd.s32 1, %s12
    $region7: #{tpu_custom_call.1} parent=1 // loop_footer_branch
      %11 = sbr.rel target = $region3
    $region8: #{tpu_custom_call.1} parent=1 // loop_exit
      _
    %2382 = vsyncpa [#allocation3], 1
    %s2383 = scalar_lea.sflag [#allocation3], 1
    %2384 = vsyncpa %s2383, 1

</llo_original>
